<compile_context>
chip_gen: v6e
topology: v6e:2x2x1
jax: 0.10.0
libtpu: 0.0.40
codegen_flags: <defaults>
</compile_context>

<pallas_src>
import jax
import jax.numpy as jnp
from jax import lax
from jax.experimental import pallas as pl
from jax.experimental.pallas import tpu as pltpu


def _round_up(n, m):
    return ((n + m - 1) // m) * m


def _choose_tile_b(B, max_tile=4096, min_tile=512):
    """Pick a batch tile: big enough to amortize per-step overhead (>=512 lanes),
    small enough to leave >=2 grid steps for v7x 2-TC sharding when B allows."""
    if B < 8:
        return B                          # block == full array -> no (8,128) issue
    two_way = _round_up(pl.cdiv(B, 2), 8)  # aim for >= 2 grid steps
    tile = max(min(max_tile, two_way), min_tile)
    return min(tile, _round_up(B, 8))


def _autoencoder_kernel(x_ref, w1_ref, w2_ref, w3_ref, w4_ref,
                        b1_ref, b2_ref, b3_ref, b4_ref, out_ref):
    """Fused 4-layer MLP for one batch tile.

    x_ref   : (tile_b, input_dim)  f32   (streamed)
    wN_ref  : (out_N, in_N)        bf16  (VMEM-resident across grid steps)
    b1..b3  : (out_N, 1)           f32   (column bias, feature-major layers)
    b4_ref  : (1, input_dim)       f32   (row bias, batch-major output layer)
    out_ref : (tile_b, input_dim)  f32
    """
    x = x_ref[...].astype(jnp.bfloat16)                      # (tile_b, in)

    def fm_layer(w_ref, b_ref, h, h_contract_axis):
        # (out, in) contracted with h -> feature-major (out, tile_b)
        acc = lax.dot_general(
            w_ref[...], h,
            dimension_numbers=(((1,), (h_contract_axis,)), ((), ())),
            preferred_element_type=jnp.float32)
        acc = acc + b_ref[...]                               # (out, 1) over lanes
        return jnp.maximum(acc, 0.0).astype(jnp.bfloat16)

    h1 = fm_layer(w1_ref, b1_ref, x, 1)                      # (encoding_dim, tile_b)
    h2 = fm_layer(w2_ref, b2_ref, h1, 0)                     # (encod_dim,    tile_b)
    h3 = fm_layer(w3_ref, b3_ref, h2, 0)                     # (encoding_dim, tile_b)

    # Last layer emits batch-major output directly: (tile_b, input_dim).
    acc = lax.dot_general(
        h3, w4_ref[...],
        dimension_numbers=(((0,), (1,)), ((), ())),
        preferred_element_type=jnp.float32)
    acc = acc + b4_ref[...]                                  # (1, input_dim) over rows
    out_ref[...] = jnp.maximum(acc, 0.0).astype(out_ref.dtype)


def _mlp_reference(x, params):
    """Plain-JAX forward matching the kernel's numerics (bf16 weights /
    activations, f32 accumulation + epilogue). Also used as small-batch fallback."""
    def layer(h, w, b):
        h = h.astype(jnp.bfloat16).astype(jnp.float32)
        return jnp.maximum(h @ w.astype(jnp.float32).T + b.reshape(1, -1), 0.0)

    h = layer(x, params["w1"], params["b1"])
    h = layer(h, params["w2"], params["b2"])
    h = layer(h, params["w3"], params["b3"])
    return layer(h, params["w4"], params["b4"])


def autoencoder_forward(x, params, *, tile_b=None, min_kernel_batch=512):
    """x: (B, input_dim) f32. params: (out, in) bf16 weights, (out,) f32 biases."""
    B, input_dim = x.shape
    w1, w2, w3, w4 = params["w1"], params["w2"], params["w3"], params["w4"]
    b1, b2, b3, b4 = params["b1"], params["b2"], params["b3"], params["b4"]
    encoding_dim, encod_dim = w1.shape[0], w2.shape[0]

    # Tiny batches never beat fused XLA through a pallas_call's fixed overhead.
    if tile_b is None and B < min_kernel_batch:
        return _mlp_reference(x, params)

    if tile_b is None:
        tile_b = _choose_tile_b(B)
    grid = (pl.cdiv(B, tile_b),)   # tail tile over-reads; OOB writes are masked

    # Column biases for feature-major hidden layers, row bias for the output layer.
    b1c, b2c, b3c = (b.reshape(-1, 1) for b in (b1, b2, b3))
    b4r = b4.reshape(1, -1)

    resident = lambda arr: pl.BlockSpec(arr.shape, lambda i: (0, 0))

    # VMEM budget from real buffer sizes + headroom, capped well under v7x 64 MiB.
    resident_bytes = sum(int(a.size) * a.dtype.itemsize
                         for a in (w1, w2, w3, w4, b1c, b2c, b3c, b4r))
    stream_bytes = 2 * 2 * tile_b * input_dim * 4      # x + out, double-buffered f32
    interm_bytes = 6 * input_dim * tile_b * 4          # bound on live intermediates
    vmem_limit = int(min(32 << 20,
                         max(16 << 20,
                             resident_bytes + stream_bytes + interm_bytes + (4 << 20))))

    flops = 2 * B * (input_dim * encoding_dim + encoding_dim * encod_dim
                     + encod_dim * encoding_dim + encoding_dim * input_dim)
    bytes_accessed = 2 * B * input_dim * 4 + resident_bytes   # x + out + params
    cost = pl.CostEstimate(flops=flops, transcendentals=0,
                           bytes_accessed=bytes_accessed)

    out = pl.pallas_call(
        _autoencoder_kernel,
        out_shape=jax.ShapeDtypeStruct((B, input_dim), jnp.float32),
        grid=grid,
        in_specs=[
            pl.BlockSpec((tile_b, input_dim), lambda i: (i, 0)),   # x: streamed
            resident(w1), resident(w2), resident(w3), resident(w4),
            resident(b1c), resident(b2c), resident(b3c), resident(b4r),
        ],
        out_specs=pl.BlockSpec((tile_b, input_dim), lambda i: (i, 0)),
        compiler_params=pltpu.CompilerParams(
            dimension_semantics=("parallel",),
            vmem_limit_bytes=vmem_limit,
        ),
        cost_estimate=cost,
    )(x, w1, w2, w3, w4, b1c, b2c, b3c, b4r)

    return out


def init_params(key, input_dim, encoding_dim, encod_dim):
    """PyTorch-default init. Weights stored (out, in) bf16; biases (out,) f32."""
    ks = jax.random.split(key, 8)

    def linear(kw, kb, fan_in, fan_out):
        bound = 1.0 / (fan_in ** 0.5)
        w = jax.random.uniform(kw, (fan_out, fan_in), jnp.float32, -bound, bound)
        b = jax.random.uniform(kb, (fan_out,), jnp.float32, -bound, bound)
        return w.astype(jnp.bfloat16), b

    w1, b1 = linear(ks[0], ks[1], input_dim, encoding_dim)
    w2, b2 = linear(ks[2], ks[3], encoding_dim, encod_dim)
    w3, b3 = linear(ks[4], ks[5], encod_dim, encoding_dim)
    w4, b4 = linear(ks[6], ks[7], encoding_dim, input_dim)
    return dict(w1=w1, b1=b1, w2=w2, b2=b2, w3=w3, b3=b3, w4=w4, b4=b4)


autoencoder_ref = _mlp_reference


if __name__ == "__main__":
    input_dim, encoding_dim, encod_dim = 64, 32, 16

    key = jax.random.PRNGKey(0)
    k_x, k_p = jax.random.split(key)
    params = init_params(k_p, input_dim, encoding_dim, encod_dim)

    # 1) Main check: exercises the Pallas kernel path (B >= min_kernel_batch).
    B = 1024
    x = jax.random.normal(k_x, (B, input_dim), dtype=jnp.float32)
    out = jax.block_until_ready(autoencoder_forward(x, params))
    ref = autoencoder_ref(x, params)
    assert out.shape == (B, input_dim)
    assert jnp.allclose(out, ref, atol=1e-2, rtol=1e-2), "kernel mismatch vs reference"

    # 2) Tail handling: batch not a multiple of the tile (pl.cdiv over-read path).
    B2 = 1000
    out2 = jax.block_until_ready(autoencoder_forward(x[:B2], params))
    assert out2.shape == (B2, input_dim)
    assert jnp.allclose(out2, ref[:B2], atol=1e-2, rtol=1e-2), "tail-tile mismatch"

    # 3) Small-batch fallback path (plain XLA, B < 512).
    out3 = jax.block_until_ready(autoencoder_forward(x[:8], params))
    assert jnp.allclose(out3, ref[:8], atol=1e-2, rtol=1e-2), "fallback mismatch"

    print("KERNEL_OK")
</pallas_src>

<mosaic_0001>
module attributes {stable_mosaic.version = 11 : i64} {
  func.func @_autoencoder_kernel(%arg0: i32, %arg1: memref<512x64xf32, #tpu.memory_space<vmem>>, %arg2: memref<32x64xbf16, #tpu.memory_space<vmem>>, %arg3: memref<16x32xbf16, #tpu.memory_space<vmem>>, %arg4: memref<32x16xbf16, #tpu.memory_space<vmem>>, %arg5: memref<64x32xbf16, #tpu.memory_space<vmem>>, %arg6: memref<32x1xf32, #tpu.memory_space<vmem>>, %arg7: memref<16x1xf32, #tpu.memory_space<vmem>>, %arg8: memref<32x1xf32, #tpu.memory_space<vmem>>, %arg9: memref<1x64xf32, #tpu.memory_space<vmem>>, %arg10: memref<512x64xf32, #tpu.memory_space<vmem>>) attributes {dimension_semantics = [#tpu.dimension_semantics<parallel>], iteration_bounds = array<i64: 2>, scalar_prefetch = 0 : i64, scratch_operands = 0 : i64, tpu.core_type = #tpu.core_type<tc>, window_params = [{transform_indices = @transform_0, window_bounds = array<i64: 512, 64>}, {pipeline_mode = #tpu.pipeline_mode<synchronous>, transform_indices = @transform_1, window_bounds = array<i64: 32, 64>}, {pipeline_mode = #tpu.pipeline_mode<synchronous>, transform_indices = @transform_2, window_bounds = array<i64: 16, 32>}, {pipeline_mode = #tpu.pipeline_mode<synchronous>, transform_indices = @transform_3, window_bounds = array<i64: 32, 16>}, {pipeline_mode = #tpu.pipeline_mode<synchronous>, transform_indices = @transform_4, window_bounds = array<i64: 64, 32>}, {pipeline_mode = #tpu.pipeline_mode<synchronous>, transform_indices = @transform_5, window_bounds = array<i64: 32, 1>}, {pipeline_mode = #tpu.pipeline_mode<synchronous>, transform_indices = @transform_6, window_bounds = array<i64: 16, 1>}, {pipeline_mode = #tpu.pipeline_mode<synchronous>, transform_indices = @transform_7, window_bounds = array<i64: 32, 1>}, {pipeline_mode = #tpu.pipeline_mode<synchronous>, transform_indices = @transform_8, window_bounds = array<i64: 1, 64>}, {transform_indices = @transform_9, window_bounds = array<i64: 512, 64>}]} {
    %c0 = arith.constant 0 : index
    %c0_0 = arith.constant 0 : index
    %0 = vector.load %arg1[%c0, %c0_0] : memref<512x64xf32, #tpu.memory_space<vmem>>, vector<512x64xf32>
    %1 = arith.truncf %0 : vector<512x64xf32> to vector<512x64xbf16>
    %c0_1 = arith.constant 0 : index
    %c0_2 = arith.constant 0 : index
    %2 = vector.load %arg2[%c0_1, %c0_2] : memref<32x64xbf16, #tpu.memory_space<vmem>>, vector<32x64xbf16>
    %cst = arith.constant dense<0.000000e+00> : vector<32x512xf32>
    %3 = tpu.matmul %2, %1, %cst {dimension_numbers = #tpu.dot_dimension_numbers<[1], [1], [0], [0], [0, 0, 1, 0], [], []>} : vector<32x64xbf16>, vector<512x64xbf16>, vector<32x512xf32> -> vector<32x512xf32>
    %c0_3 = arith.constant 0 : index
    %c0_4 = arith.constant 0 : index
    %4 = vector.load %arg6[%c0_3, %c0_4] : memref<32x1xf32, #tpu.memory_space<vmem>>, vector<32x1xf32>
    %5 = vector.broadcast %4 : vector<32x1xf32> to vector<32x512xf32>
    %6 = arith.addf %3, %5 : vector<32x512xf32>
    %cst_5 = arith.constant 0.000000e+00 : f32
    %7 = vector.broadcast %cst_5 : f32 to vector<32x512xf32>
    %8 = arith.maximumf %6, %7 : vector<32x512xf32>
    %9 = arith.truncf %8 : vector<32x512xf32> to vector<32x512xbf16>
    %c0_6 = arith.constant 0 : index
    %c0_7 = arith.constant 0 : index
    %10 = vector.load %arg3[%c0_6, %c0_7] : memref<16x32xbf16, #tpu.memory_space<vmem>>, vector<16x32xbf16>
    %cst_8 = arith.constant dense<0.000000e+00> : vector<16x512xf32>
    %11 = tpu.matmul %10, %9, %cst_8 {dimension_numbers = #tpu.dot_dimension_numbers<[1], [0], [0], [1], [0, 0, 1, 1], [], []>} : vector<16x32xbf16>, vector<32x512xbf16>, vector<16x512xf32> -> vector<16x512xf32>
    %c0_9 = arith.constant 0 : index
    %c0_10 = arith.constant 0 : index
    %12 = vector.load %arg7[%c0_9, %c0_10] : memref<16x1xf32, #tpu.memory_space<vmem>>, vector<16x1xf32>
    %13 = vector.broadcast %12 : vector<16x1xf32> to vector<16x512xf32>
    %14 = arith.addf %11, %13 : vector<16x512xf32>
    %cst_11 = arith.constant 0.000000e+00 : f32
    %15 = vector.broadcast %cst_11 : f32 to vector<16x512xf32>
    %16 = arith.maximumf %14, %15 : vector<16x512xf32>
    %17 = arith.truncf %16 : vector<16x512xf32> to vector<16x512xbf16>
    %c0_12 = arith.constant 0 : index
    %c0_13 = arith.constant 0 : index
    %18 = vector.load %arg4[%c0_12, %c0_13] : memref<32x16xbf16, #tpu.memory_space<vmem>>, vector<32x16xbf16>
    %cst_14 = arith.constant dense<0.000000e+00> : vector<32x512xf32>
    %19 = tpu.matmul %18, %17, %cst_14 {dimension_numbers = #tpu.dot_dimension_numbers<[1], [0], [0], [1], [0, 0, 1, 1], [], []>} : vector<32x16xbf16>, vector<16x512xbf16>, vector<32x512xf32> -> vector<32x512xf32>
    %c0_15 = arith.constant 0 : index
    %c0_16 = arith.constant 0 : index
    %20 = vector.load %arg8[%c0_15, %c0_16] : memref<32x1xf32, #tpu.memory_space<vmem>>, vector<32x1xf32>
    %21 = vector.broadcast %20 : vector<32x1xf32> to vector<32x512xf32>
    %22 = arith.addf %19, %21 : vector<32x512xf32>
    %cst_17 = arith.constant 0.000000e+00 : f32
    %23 = vector.broadcast %cst_17 : f32 to vector<32x512xf32>
    %24 = arith.maximumf %22, %23 : vector<32x512xf32>
    %25 = arith.truncf %24 : vector<32x512xf32> to vector<32x512xbf16>
    %c0_18 = arith.constant 0 : index
    %c0_19 = arith.constant 0 : index
    %26 = vector.load %arg5[%c0_18, %c0_19] : memref<64x32xbf16, #tpu.memory_space<vmem>>, vector<64x32xbf16>
    %cst_20 = arith.constant dense<0.000000e+00> : vector<512x64xf32>
    %27 = tpu.matmul %25, %26, %cst_20 {dimension_numbers = #tpu.dot_dimension_numbers<[0], [1], [1], [0], [0, 1, 1, 0], [], []>} : vector<32x512xbf16>, vector<64x32xbf16>, vector<512x64xf32> -> vector<512x64xf32>
    %c0_21 = arith.constant 0 : index
    %c0_22 = arith.constant 0 : index
    %28 = vector.load %arg9[%c0_21, %c0_22] : memref<1x64xf32, #tpu.memory_space<vmem>>, vector<1x64xf32>
    %29 = vector.broadcast %28 : vector<1x64xf32> to vector<512x64xf32>
    %30 = arith.addf %27, %29 : vector<512x64xf32>
    %cst_23 = arith.constant 0.000000e+00 : f32
    %31 = vector.broadcast %cst_23 : f32 to vector<512x64xf32>
    %32 = arith.maximumf %30, %31 : vector<512x64xf32>
    %c0_24 = arith.constant 0 : index
    %c0_25 = arith.constant 0 : index
    %33 = vector.load %arg10[%c0_24, %c0_25] : memref<512x64xf32, #tpu.memory_space<vmem>>, vector<512x64xf32>
    tpu.vector_store %arg10[%c0_24, %c0_25], %32 {strides = array<i32>} : memref<512x64xf32, #tpu.memory_space<vmem>>, vector<512x64xf32>,
    return
  }
  func.func @transform_0(%arg0: i32) -> (i32, i32) {
    %c0_i32 = arith.constant 0 : i32
    %c0_i32_0 = arith.constant 0 : i32
    return %arg0, %c0_i32 : i32, i32
  }
  func.func @transform_1(%arg0: i32) -> (i32, i32) {
    %c0_i32 = arith.constant 0 : i32
    %c0_i32_0 = arith.constant 0 : i32
    %c0_i32_1 = arith.constant 0 : i32
    return %c0_i32, %c0_i32_0 : i32, i32
  }
  func.func @transform_2(%arg0: i32) -> (i32, i32) {
    %c0_i32 = arith.constant 0 : i32
    %c0_i32_0 = arith.constant 0 : i32
    %c0_i32_1 = arith.constant 0 : i32
    return %c0_i32, %c0_i32_0 : i32, i32
  }
  func.func @transform_3(%arg0: i32) -> (i32, i32) {
    %c0_i32 = arith.constant 0 : i32
    %c0_i32_0 = arith.constant 0 : i32
    %c0_i32_1 = arith.constant 0 : i32
    return %c0_i32, %c0_i32_0 : i32, i32
  }
  func.func @transform_4(%arg0: i32) -> (i32, i32) {
    %c0_i32 = arith.constant 0 : i32
    %c0_i32_0 = arith.constant 0 : i32
    %c0_i32_1 = arith.constant 0 : i32
    return %c0_i32, %c0_i32_0 : i32, i32
  }
  func.func @transform_5(%arg0: i32) -> (i32, i32) {
    %c0_i32 = arith.constant 0 : i32
    %c0_i32_0 = arith.constant 0 : i32
    %c0_i32_1 = arith.constant 0 : i32
    return %c0_i32, %c0_i32_0 : i32, i32
  }
  func.func @transform_6(%arg0: i32) -> (i32, i32) {
    %c0_i32 = arith.constant 0 : i32
    %c0_i32_0 = arith.constant 0 : i32
    %c0_i32_1 = arith.constant 0 : i32
    return %c0_i32, %c0_i32_0 : i32, i32
  }
  func.func @transform_7(%arg0: i32) -> (i32, i32) {
    %c0_i32 = arith.constant 0 : i32
    %c0_i32_0 = arith.constant 0 : i32
    %c0_i32_1 = arith.constant 0 : i32
    return %c0_i32, %c0_i32_0 : i32, i32
  }
  func.func @transform_8(%arg0: i32) -> (i32, i32) {
    %c0_i32 = arith.constant 0 : i32
    %c0_i32_0 = arith.constant 0 : i32
    %c0_i32_1 = arith.constant 0 : i32
    return %c0_i32, %c0_i32_0 : i32, i32
  }
  func.func @transform_9(%arg0: i32) -> (i32, i32) {
    %c0_i32 = arith.constant 0 : i32
    %c0_i32_0 = arith.constant 0 : i32
    return %arg0, %c0_i32 : i32, i32
  }
}

</mosaic_0001>

<llo_original>
// kernel: tpu_custom_call.1
$region0: #{tpu_custom_call.1}
  #allocation0 [shape = 'u32[]', space=smem, size = 0x4, offset = 0x4, fixed_abs, tag = 'smem constant byte address 0x4 - core index']
  #allocation1 [shape = 'u32[144,128]{1,0:T(1,128)}', space=vmem, size = 0x12000, scoped, tag = 'internal scratch']
  %s0 = inlined_call_operand.vmem [shape: f32[1024,64], index: 0, kind: input, shape index: {}]
  %s1 = inlined_call_operand.vmem [shape: bf16[32,64], index: 1, kind: input, shape index: {}]
  %s2 = inlined_call_operand.vmem [shape: bf16[16,32], index: 2, kind: input, shape index: {}]
  %s3 = inlined_call_operand.vmem [shape: bf16[32,16], index: 3, kind: input, shape index: {}]
  %s4 = inlined_call_operand.vmem [shape: bf16[64,32], index: 4, kind: input, shape index: {}]
  %s5 = inlined_call_operand.vmem [shape: f32[32,1], index: 5, kind: input, shape index: {}]
  %s6 = inlined_call_operand.vmem [shape: f32[16,1], index: 6, kind: input, shape index: {}]
  %s7 = inlined_call_operand.vmem [shape: f32[32,1], index: 7, kind: input, shape index: {}]
  %s8 = inlined_call_operand.vmem [shape: f32[1,64], index: 8, kind: input, shape index: {}]
  %s9 = inlined_call_operand.vmem [shape: f32[1024,64], index: 9, kind: output, shape index: {}]
  %s10 = sld [smem:[#allocation0]]
  $region69: #{tpu_custom_call.1} parent=0
    _
  %s12 = ssub.s32 1, %s10
  %s13 = scalar_select 0, %s12, %s10
  loop: start=0, step=1, limit=4
  $region2: #{tpu_custom_call.1} parent=0 // loop_pre_header
    _
  $region3: #{tpu_custom_call.1} parent=0 // loop_header
    %s15 = sphi 0, %s19
    %p16 = scmp.ge.s32.totalorder %s15, 4
    %s25 = sphi 0, %s27
    %s28 = sphi 0, %s25
    %s29 = sphi 0, %s28
    %s45 = sphi 0, %s29
    %s49 = sphi 0, %s49
    %s51 = sphi 0, %s49
    %s52 = sphi 0, %s51
    %s66 = sphi 0, %s52
    %s70 = sphi 0, %s70
    %s72 = sphi 0, %s70
    %s73 = sphi 0, %s72
    %s87 = sphi 0, %s73
    %s91 = sphi 0, %s91
    %s93 = sphi 0, %s91
    %s94 = sphi 0, %s93
    %s108 = sphi 0, %s94
    %s112 = sphi 0, %s112
    %s114 = sphi 0, %s112
    %s115 = sphi 0, %s114
    %s129 = sphi 0, %s115
    %s133 = sphi 0, %s133
    %s135 = sphi 0, %s133
    %s136 = sphi 0, %s135
    %s150 = sphi 0, %s136
    %s154 = sphi 0, %s154
    %s156 = sphi 0, %s154
    %s157 = sphi 0, %s156
    %s171 = sphi 0, %s157
    %s175 = sphi 0, %s175
    %s177 = sphi 0, %s175
    %s178 = sphi 0, %s177
    %s192 = sphi 0, %s178
    %s196 = sphi 0, %s196
    %s198 = sphi 0, %s196
    %s199 = sphi 0, %s198
    %s213 = sphi 0, %s199
    %s219 = sphi 0, %s221
    %s222 = sphi 0, %s219
    %s223 = sphi 0, %s222
    %s239 = sphi 0, %s223
  $region4: #{tpu_custom_call.1} parent=0 // loop_header_branch
    %18 = sbr.rel (%p16) target = $region8
  $region5: #{tpu_custom_call.1} parent=0 // loop_body
    %s20 = ssub.s32 %s15, 1
    %s21 = ssub.s32 %s15, 2
    %s22 = sadd.s32 %s15, 1
    %s23 = ssub.s32 %s15, %s22
    %p24 = scmp.eq.s32.totalorder %s23, 0
    %s26 = sadd.s32 %s25, 1
    %s27 = scalar_select %p24, %s25, %s26
    %p30 = pneg %p24
    %p31 = scmp.eq.s32.totalorder %s15, 1
    %p32 = por %p30, %p31
    %p33 = scmp.ne.s32.totalorder %s25, %s28
    %p34 = scmp.eq.s32.totalorder %s15, 0
    %p35 = por %p33, %p34
    %p36 = scmp.ne.s32.totalorder %s25, %s28
    %p37 = scmp.eq.s32.totalorder %s20, 1
    %p38 = por %p36, %p37
    %p39 = scmp.ne.s32.totalorder %s28, %s29
    %p40 = scmp.eq.s32.totalorder %s20, 0
    %p41 = por %p39, %p40
    %p42 = scmp.ne.s32.totalorder %s28, %s29
    %p43 = scmp.eq.s32.totalorder %s21, 1
    %p44 = por %p42, %p43
    %p46 = scmp.ne.s32.totalorder %s29, %s45
    %p47 = scmp.eq.s32.totalorder %s21, 0
    %p48 = por %p46, %p47
    %s50 = sadd.s32 %s49, 1
    %p53 = scmp.eq.s32.totalorder %s15, 1
    %p54 = scmp.ne.s32.totalorder %s49, %s51
    %p55 = scmp.eq.s32.totalorder %s15, 0
    %p56 = por %p54, %p55
    %p57 = scmp.ne.s32.totalorder %s49, %s51
    %p58 = scmp.eq.s32.totalorder %s20, 1
    %p59 = por %p57, %p58
    %p60 = scmp.ne.s32.totalorder %s51, %s52
    %p61 = scmp.eq.s32.totalorder %s20, 0
    %p62 = por %p60, %p61
    %p63 = scmp.ne.s32.totalorder %s51, %s52
    %p64 = scmp.eq.s32.totalorder %s21, 1
    %p65 = por %p63, %p64
    %p67 = scmp.ne.s32.totalorder %s52, %s66
    %p68 = scmp.eq.s32.totalorder %s21, 0
    %p69 = por %p67, %p68
    %s71 = sadd.s32 %s70, 1
    %p74 = scmp.eq.s32.totalorder %s15, 1
    %p75 = scmp.ne.s32.totalorder %s70, %s72
    %p76 = scmp.eq.s32.totalorder %s15, 0
    %p77 = por %p75, %p76
    %p78 = scmp.ne.s32.totalorder %s70, %s72
    %p79 = scmp.eq.s32.totalorder %s20, 1
    %p80 = por %p78, %p79
    %p81 = scmp.ne.s32.totalorder %s72, %s73
    %p82 = scmp.eq.s32.totalorder %s20, 0
    %p83 = por %p81, %p82
    %p84 = scmp.ne.s32.totalorder %s72, %s73
    %p85 = scmp.eq.s32.totalorder %s21, 1
    %p86 = por %p84, %p85
    %p88 = scmp.ne.s32.totalorder %s73, %s87
    %p89 = scmp.eq.s32.totalorder %s21, 0
    %p90 = por %p88, %p89
    %s92 = sadd.s32 %s91, 1
    %p95 = scmp.eq.s32.totalorder %s15, 1
    %p96 = scmp.ne.s32.totalorder %s91, %s93
    %p97 = scmp.eq.s32.totalorder %s15, 0
    %p98 = por %p96, %p97
    %p99 = scmp.ne.s32.totalorder %s91, %s93
    %p100 = scmp.eq.s32.totalorder %s20, 1
    %p101 = por %p99, %p100
    %p102 = scmp.ne.s32.totalorder %s93, %s94
    %p103 = scmp.eq.s32.totalorder %s20, 0
    %p104 = por %p102, %p103
    %p105 = scmp.ne.s32.totalorder %s93, %s94
    %p106 = scmp.eq.s32.totalorder %s21, 1
    %p107 = por %p105, %p106
    %p109 = scmp.ne.s32.totalorder %s94, %s108
    %p110 = scmp.eq.s32.totalorder %s21, 0
    %p111 = por %p109, %p110
    %s113 = sadd.s32 %s112, 1
    %p116 = scmp.eq.s32.totalorder %s15, 1
    %p117 = scmp.ne.s32.totalorder %s112, %s114
    %p118 = scmp.eq.s32.totalorder %s15, 0
    %p119 = por %p117, %p118
    %p120 = scmp.ne.s32.totalorder %s112, %s114
    %p121 = scmp.eq.s32.totalorder %s20, 1
    %p122 = por %p120, %p121
    %p123 = scmp.ne.s32.totalorder %s114, %s115
    %p124 = scmp.eq.s32.totalorder %s20, 0
    %p125 = por %p123, %p124
    %p126 = scmp.ne.s32.totalorder %s114, %s115
    %p127 = scmp.eq.s32.totalorder %s21, 1
    %p128 = por %p126, %p127
    %p130 = scmp.ne.s32.totalorder %s115, %s129
    %p131 = scmp.eq.s32.totalorder %s21, 0
    %p132 = por %p130, %p131
    %s134 = sadd.s32 %s133, 1
    %p137 = scmp.eq.s32.totalorder %s15, 1
    %p138 = scmp.ne.s32.totalorder %s133, %s135
    %p139 = scmp.eq.s32.totalorder %s15, 0
    %p140 = por %p138, %p139
    %p141 = scmp.ne.s32.totalorder %s133, %s135
    %p142 = scmp.eq.s32.totalorder %s20, 1
    %p143 = por %p141, %p142
    %p144 = scmp.ne.s32.totalorder %s135, %s136
    %p145 = scmp.eq.s32.totalorder %s20, 0
    %p146 = por %p144, %p145
    %p147 = scmp.ne.s32.totalorder %s135, %s136
    %p148 = scmp.eq.s32.totalorder %s21, 1
    %p149 = por %p147, %p148
    %p151 = scmp.ne.s32.totalorder %s136, %s150
    %p152 = scmp.eq.s32.totalorder %s21, 0
    %p153 = por %p151, %p152
    %s155 = sadd.s32 %s154, 1
    %p158 = scmp.eq.s32.totalorder %s15, 1
    %p159 = scmp.ne.s32.totalorder %s154, %s156
    %p160 = scmp.eq.s32.totalorder %s15, 0
    %p161 = por %p159, %p160
    %p162 = scmp.ne.s32.totalorder %s154, %s156
    %p163 = scmp.eq.s32.totalorder %s20, 1
    %p164 = por %p162, %p163
    %p165 = scmp.ne.s32.totalorder %s156, %s157
    %p166 = scmp.eq.s32.totalorder %s20, 0
    %p167 = por %p165, %p166
    %p168 = scmp.ne.s32.totalorder %s156, %s157
    %p169 = scmp.eq.s32.totalorder %s21, 1
    %p170 = por %p168, %p169
    %p172 = scmp.ne.s32.totalorder %s157, %s171
    %p173 = scmp.eq.s32.totalorder %s21, 0
    %p174 = por %p172, %p173
    %s176 = sadd.s32 %s175, 1
    %p179 = scmp.eq.s32.totalorder %s15, 1
    %p180 = scmp.ne.s32.totalorder %s175, %s177
    %p181 = scmp.eq.s32.totalorder %s15, 0
    %p182 = por %p180, %p181
    %p183 = scmp.ne.s32.totalorder %s175, %s177
    %p184 = scmp.eq.s32.totalorder %s20, 1
    %p185 = por %p183, %p184
    %p186 = scmp.ne.s32.totalorder %s177, %s178
    %p187 = scmp.eq.s32.totalorder %s20, 0
    %p188 = por %p186, %p187
    %p189 = scmp.ne.s32.totalorder %s177, %s178
    %p190 = scmp.eq.s32.totalorder %s21, 1
    %p191 = por %p189, %p190
    %p193 = scmp.ne.s32.totalorder %s178, %s192
    %p194 = scmp.eq.s32.totalorder %s21, 0
    %p195 = por %p193, %p194
    %s197 = sadd.s32 %s196, 1
    %p200 = scmp.eq.s32.totalorder %s15, 1
    %p201 = scmp.ne.s32.totalorder %s196, %s198
    %p202 = scmp.eq.s32.totalorder %s15, 0
    %p203 = por %p201, %p202
    %p204 = scmp.ne.s32.totalorder %s196, %s198
    %p205 = scmp.eq.s32.totalorder %s20, 1
    %p206 = por %p204, %p205
    %p207 = scmp.ne.s32.totalorder %s198, %s199
    %p208 = scmp.eq.s32.totalorder %s20, 0
    %p209 = por %p207, %p208
    %p210 = scmp.ne.s32.totalorder %s198, %s199
    %p211 = scmp.eq.s32.totalorder %s21, 1
    %p212 = por %p210, %p211
    %p214 = scmp.ne.s32.totalorder %s199, %s213
    %p215 = scmp.eq.s32.totalorder %s21, 0
    %p216 = por %p214, %p215
    %s217 = ssub.s32 %s15, %s22
    %p218 = scmp.eq.s32.totalorder %s217, 0
    %s220 = sadd.s32 %s219, 1
    %s221 = scalar_select %p218, %s219, %s220
    %p224 = pneg %p218
    %p225 = scmp.eq.s32.totalorder %s15, 1
    %p226 = por %p224, %p225
    %p227 = scmp.ne.s32.totalorder %s219, %s222
    %p228 = scmp.eq.s32.totalorder %s15, 0
    %p229 = por %p227, %p228
    %p230 = scmp.ne.s32.totalorder %s219, %s222
    %p231 = scmp.eq.s32.totalorder %s20, 1
    %p232 = por %p230, %p231
    %p233 = scmp.ne.s32.totalorder %s222, %s223
    %p234 = scmp.eq.s32.totalorder %s20, 0
    %p235 = por %p233, %p234
    %p236 = scmp.ne.s32.totalorder %s222, %s223
    %p237 = scmp.eq.s32.totalorder %s21, 1
    %p238 = por %p236, %p237
    %p240 = scmp.ne.s32.totalorder %s223, %s239
    %p241 = scmp.eq.s32.totalorder %s21, 0
    %p242 = por %p240, %p241
    %p243 = scmp.le.s32.totalorder 1, %s15
    %p244 = scmp.lt.s32.totalorder %s15, 3
    %p245 = pnand %p243, %p244
    %p246 = pneg %p245
    // Predicated region
    $region9: #{tpu_custom_call.1} parent=5 // pred_check
      _
    $region10: #{tpu_custom_call.1} parent=5 // pred_check_branch
      %248 = sbr.rel (%p245) target = $region12
    $region11: #{tpu_custom_call.1} parent=5 // pred_region
      %s249 = ssub.s32 %s15, 1
      // Predicated region
      $region13: #{tpu_custom_call.1} parent=11 // pred_check
        %p250 = pneg %p62
      $region14: #{tpu_custom_call.1} parent=11 // pred_check_branch
        %252 = sbr.rel (%p250) target = $region16
      $region15: #{tpu_custom_call.1} parent=11 // pred_region
        _
      $region16: #{tpu_custom_call.1} parent=11 // pred_fallthru
        _
      // Predicated region
      $region17: #{tpu_custom_call.1} parent=11 // pred_check
        %p253 = pneg %p83
      $region18: #{tpu_custom_call.1} parent=11 // pred_check_branch
        %255 = sbr.rel (%p253) target = $region20
      $region19: #{tpu_custom_call.1} parent=11 // pred_region
        _
      $region20: #{tpu_custom_call.1} parent=11 // pred_fallthru
        _
      // Predicated region
      $region21: #{tpu_custom_call.1} parent=11 // pred_check
        %p256 = pneg %p104
      $region22: #{tpu_custom_call.1} parent=11 // pred_check_branch
        %258 = sbr.rel (%p256) target = $region24
      $region23: #{tpu_custom_call.1} parent=11 // pred_region
        _
      $region24: #{tpu_custom_call.1} parent=11 // pred_fallthru
        _
      // Predicated region
      $region25: #{tpu_custom_call.1} parent=11 // pred_check
        %p259 = pneg %p125
      $region26: #{tpu_custom_call.1} parent=11 // pred_check_branch
        %261 = sbr.rel (%p259) target = $region28
      $region27: #{tpu_custom_call.1} parent=11 // pred_region
        _
      $region28: #{tpu_custom_call.1} parent=11 // pred_fallthru
        _
      // Predicated region
      $region29: #{tpu_custom_call.1} parent=11 // pred_check
        %p262 = pneg %p146
      $region30: #{tpu_custom_call.1} parent=11 // pred_check_branch
        %264 = sbr.rel (%p262) target = $region32
      $region31: #{tpu_custom_call.1} parent=11 // pred_region
        _
      $region32: #{tpu_custom_call.1} parent=11 // pred_fallthru
        _
      // Predicated region
      $region33: #{tpu_custom_call.1} parent=11 // pred_check
        %p265 = pneg %p167
      $region34: #{tpu_custom_call.1} parent=11 // pred_check_branch
        %267 = sbr.rel (%p265) target = $region36
      $region35: #{tpu_custom_call.1} parent=11 // pred_region
        _
      $region36: #{tpu_custom_call.1} parent=11 // pred_fallthru
        _
      // Predicated region
      $region37: #{tpu_custom_call.1} parent=11 // pred_check
        %p268 = pneg %p188
      $region38: #{tpu_custom_call.1} parent=11 // pred_check_branch
        %270 = sbr.rel (%p268) target = $region40
      $region39: #{tpu_custom_call.1} parent=11 // pred_region
        _
      $region40: #{tpu_custom_call.1} parent=11 // pred_fallthru
        _
      // Predicated region
      $region41: #{tpu_custom_call.1} parent=11 // pred_check
        %p271 = pneg %p209
      $region42: #{tpu_custom_call.1} parent=11 // pred_check_branch
        %273 = sbr.rel (%p271) target = $region44
      $region43: #{tpu_custom_call.1} parent=11 // pred_region
        _
      $region44: #{tpu_custom_call.1} parent=11 // pred_fallthru
        _
    $region12: #{tpu_custom_call.1} parent=5 // pred_fallthru
      _
    %p274 = scmp.lt.s32.totalorder %s15, 2
    // Predicated region
    $region45: #{tpu_custom_call.1} parent=5 // pred_check
      %p275 = pneg %p274
    $region46: #{tpu_custom_call.1} parent=5 // pred_check_branch
      %277 = sbr.rel (%p275) target = $region48
    $region47: #{tpu_custom_call.1} parent=5 // pred_region
      // Predicated region
      $region49: #{tpu_custom_call.1} parent=47 // pred_check
        %p278 = pneg %p35
      $region50: #{tpu_custom_call.1} parent=47 // pred_check_branch
        %280 = sbr.rel (%p278) target = $region52
      $region51: #{tpu_custom_call.1} parent=47 // pred_region
        %s281 = smul.u32 64, %s15
        %p282 = scmp.lt.s32.totalorder %s281, 127
        %s283 = scalar_select %p282, %s281, 127
        %s284 = smul.addr %s283, 8
        %s285 = scalar_lea.vmem %s0, %s284
        %s286 = smul.u32 64, %s15
      $region52: #{tpu_custom_call.1} parent=47 // pred_fallthru
        _
    $region48: #{tpu_custom_call.1} parent=5 // pred_fallthru
      _
    %p287 = scmp.le.s32.totalorder 1, %s15
    %p288 = scmp.lt.s32.totalorder %s15, 3
    %p289 = pnand %p287, %p288
    %p290 = pneg %p289
    // Predicated region
    $region53: #{tpu_custom_call.1} parent=5 // pred_check
      _
    $region54: #{tpu_custom_call.1} parent=5 // pred_check_branch
      %292 = sbr.rel (%p289) target = $region56
    $region55: #{tpu_custom_call.1} parent=5 // pred_region
      %s293 = ssub.s32 %s15, 1
      %s294 = smul.u32 64, %s20
      %p295 = scmp.lt.s32.totalorder %s294, 127
      %s296 = scalar_select %p295, %s294, 127
      %s297 = smul.addr %s296, 8
      %s298 = scalar_lea.vmem %s0, %s297
      %p299 = pneg %p41
      %p300 = pneg %p38
      %p301 = pneg %p62
      %p302 = pneg %p59
      %p303 = pneg %p83
      %p304 = pneg %p80
      %p305 = pneg %p104
      %p306 = pneg %p101
      %p307 = pneg %p125
      %p308 = pneg %p122
      %p309 = pneg %p146
      %p310 = pneg %p143
      %p311 = pneg %p167
      %p312 = pneg %p164
      %p313 = pneg %p188
      %p314 = pneg %p185
      %p315 = pneg %p209
      %p316 = pneg %p206
      %p317 = pneg %p235
      %p318 = pneg %p232
      %s319 = smul.u32 64, %s20
      %p320 = scmp.lt.s32.totalorder %s319, 127
      %s321 = scalar_select %p320, %s319, 127
      %s322 = smul.addr %s321, 8
      %s323 = scalar_lea.vmem %s9, %s322
      %s324 = smul.u32 64, %s20
      %p325 = scmp.lt.s32.totalorder %s324, 127
      %s326 = scalar_select %p325, %s324, 127
      %s327 = smul.addr %s326, 8
      %s328 = scalar_lea.vmem %s0, %s327
      %s329 = smul.u32 64, %s20
      %s330 = smul.u32 64, %s20
      %p331 = scmp.lt.s32.totalorder %s330, 127
      %s332 = scalar_select %p331, %s330, 127
      %s333 = smul.addr %s332, 8
      %s334 = scalar_lea.vmem %s9, %s333
      %s335 = smul.u32 64, %s20
      %v337 = vld [vmem:[%s328] sm:$0xff]
      %v338 = vld [vmem:[%s328 + $0x8] sm:$0xff]
      %v339 = vld [vmem:[%s328 + $0x10] sm:$0xff]
      %v340 = vld [vmem:[%s328 + $0x18] sm:$0xff]
      %v341 = vld [vmem:[%s328 + $0x20] sm:$0xff]
      %v342 = vld [vmem:[%s328 + $0x28] sm:$0xff]
      %v343 = vld [vmem:[%s328 + $0x30] sm:$0xff]
      %v344 = vld [vmem:[%s328 + $0x38] sm:$0xff]
      %v345 = vld [vmem:[%s328 + $0x40] sm:$0xff]
      %v346 = vld [vmem:[%s328 + $0x48] sm:$0xff]
      %v347 = vld [vmem:[%s328 + $0x50] sm:$0xff]
      %v348 = vld [vmem:[%s328 + $0x58] sm:$0xff]
      %v349 = vld [vmem:[%s328 + $0x60] sm:$0xff]
      %v350 = vld [vmem:[%s328 + $0x68] sm:$0xff]
      %v351 = vld [vmem:[%s328 + $0x70] sm:$0xff]
      %v352 = vld [vmem:[%s328 + $0x78] sm:$0xff]
      %v353 = vld [vmem:[%s328 + $0x80] sm:$0xff]
      %v354 = vld [vmem:[%s328 + $0x88] sm:$0xff]
      %v355 = vld [vmem:[%s328 + $0x90] sm:$0xff]
      %v356 = vld [vmem:[%s328 + $0x98] sm:$0xff]
      %v357 = vld [vmem:[%s328 + $0xa0] sm:$0xff]
      %v358 = vld [vmem:[%s328 + $0xa8] sm:$0xff]
      %v359 = vld [vmem:[%s328 + $0xb0] sm:$0xff]
      %v360 = vld [vmem:[%s328 + $0xb8] sm:$0xff]
      %v361 = vld [vmem:[%s328 + $0xc0] sm:$0xff]
      %v362 = vld [vmem:[%s328 + $0xc8] sm:$0xff]
      %v363 = vld [vmem:[%s328 + $0xd0] sm:$0xff]
      %v364 = vld [vmem:[%s328 + $0xd8] sm:$0xff]
      %v365 = vld [vmem:[%s328 + $0xe0] sm:$0xff]
      %v366 = vld [vmem:[%s328 + $0xe8] sm:$0xff]
      %v367 = vld [vmem:[%s328 + $0xf0] sm:$0xff]
      %v368 = vld [vmem:[%s328 + $0xf8] sm:$0xff]
      %v369 = vld [vmem:[%s328 + $0x100] sm:$0xff]
      %v370 = vld [vmem:[%s328 + $0x108] sm:$0xff]
      %v371 = vld [vmem:[%s328 + $0x110] sm:$0xff]
      %v372 = vld [vmem:[%s328 + $0x118] sm:$0xff]
      %v373 = vld [vmem:[%s328 + $0x120] sm:$0xff]
      %v374 = vld [vmem:[%s328 + $0x128] sm:$0xff]
      %v375 = vld [vmem:[%s328 + $0x130] sm:$0xff]
      %v376 = vld [vmem:[%s328 + $0x138] sm:$0xff]
      %v377 = vld [vmem:[%s328 + $0x140] sm:$0xff]
      %v378 = vld [vmem:[%s328 + $0x148] sm:$0xff]
      %v379 = vld [vmem:[%s328 + $0x150] sm:$0xff]
      %v380 = vld [vmem:[%s328 + $0x158] sm:$0xff]
      %v381 = vld [vmem:[%s328 + $0x160] sm:$0xff]
      %v382 = vld [vmem:[%s328 + $0x168] sm:$0xff]
      %v383 = vld [vmem:[%s328 + $0x170] sm:$0xff]
      %v384 = vld [vmem:[%s328 + $0x178] sm:$0xff]
      %v385 = vld [vmem:[%s328 + $0x180] sm:$0xff]
      %v386 = vld [vmem:[%s328 + $0x188] sm:$0xff]
      %v387 = vld [vmem:[%s328 + $0x190] sm:$0xff]
      %v388 = vld [vmem:[%s328 + $0x198] sm:$0xff]
      %v389 = vld [vmem:[%s328 + $0x1a0] sm:$0xff]
      %v390 = vld [vmem:[%s328 + $0x1a8] sm:$0xff]
      %v391 = vld [vmem:[%s328 + $0x1b0] sm:$0xff]
      %v392 = vld [vmem:[%s328 + $0x1b8] sm:$0xff]
      %v393 = vld [vmem:[%s328 + $0x1c0] sm:$0xff]
      %v394 = vld [vmem:[%s328 + $0x1c8] sm:$0xff]
      %v395 = vld [vmem:[%s328 + $0x1d0] sm:$0xff]
      %v396 = vld [vmem:[%s328 + $0x1d8] sm:$0xff]
      %v397 = vld [vmem:[%s328 + $0x1e0] sm:$0xff]
      %v398 = vld [vmem:[%s328 + $0x1e8] sm:$0xff]
      %v399 = vld [vmem:[%s328 + $0x1f0] sm:$0xff]
      %v400 = vld [vmem:[%s328 + $0x1f8] sm:$0xff]
      %v401 = vpack.c.bf16 %v338, %v337
      %v402 = vpack.c.bf16 %v340, %v339
      %v403 = vpack.c.bf16 %v342, %v341
      %v404 = vpack.c.bf16 %v344, %v343
      %v405 = vpack.c.bf16 %v346, %v345
      %v406 = vpack.c.bf16 %v348, %v347
      %v407 = vpack.c.bf16 %v350, %v349
      %v408 = vpack.c.bf16 %v352, %v351
      %v409 = vpack.c.bf16 %v354, %v353
      %v410 = vpack.c.bf16 %v356, %v355
      %v411 = vpack.c.bf16 %v358, %v357
      %v412 = vpack.c.bf16 %v360, %v359
      %v413 = vpack.c.bf16 %v362, %v361
      %v414 = vpack.c.bf16 %v364, %v363
      %v415 = vpack.c.bf16 %v366, %v365
      %v416 = vpack.c.bf16 %v368, %v367
      %v417 = vpack.c.bf16 %v370, %v369
      %v418 = vpack.c.bf16 %v372, %v371
      %v419 = vpack.c.bf16 %v374, %v373
      %v420 = vpack.c.bf16 %v376, %v375
      %v421 = vpack.c.bf16 %v378, %v377
      %v422 = vpack.c.bf16 %v380, %v379
      %v423 = vpack.c.bf16 %v382, %v381
      %v424 = vpack.c.bf16 %v384, %v383
      %v425 = vpack.c.bf16 %v386, %v385
      %v426 = vpack.c.bf16 %v388, %v387
      %v427 = vpack.c.bf16 %v390, %v389
      %v428 = vpack.c.bf16 %v392, %v391
      %v429 = vpack.c.bf16 %v394, %v393
      %v430 = vpack.c.bf16 %v396, %v395
      %v431 = vpack.c.bf16 %v398, %v397
      %v432 = vpack.c.bf16 %v400, %v399
      %v433 = vld [vmem:[%s1] sm:$0xf]
      %v434 = vld [vmem:[%s1 + $0x4] sm:$0xf]
      %v435 = vld [vmem:[%s1 + $0x8] sm:$0xf]
      %v436 = vld [vmem:[%s1 + $0xc] sm:$0xf]
      %v437 = vld [vmem:[%s5] sm:$0xff]
      %v438 = vld [vmem:[%s5 + $0x8] sm:$0xff]
      %v439 = vld [vmem:[%s5 + $0x10] sm:$0xff]
      %v440 = vld [vmem:[%s5 + $0x18] sm:$0xff]
      %442 = vset.pattern.permute.xlu0 0
      %443 = vperm.xlu0 %442, %v437
      %v444 = vpop.permute.xlu0 %443
      %447 = vset.pattern.permute.xlu0 0
      %448 = vperm.xlu0 %447, %v438
      %v449 = vpop.permute.xlu0 %448
      %452 = vset.pattern.permute.xlu0 0
      %453 = vperm.xlu0 %452, %v439
      %v454 = vpop.permute.xlu0 %453
      %457 = vset.pattern.permute.xlu0 0
      %458 = vperm.xlu0 %457, %v440
      %v459 = vpop.permute.xlu0 %458
      %v465 = vunpack.c.l.b16 %v433
      %v466 = vunpack.c.l.b16 %v434
      %v467 = vunpack.c.l.b16 %v435
      %v468 = vunpack.c.l.b16 %v436
      %v469 = vpack.c.b16 %v466, %v465
      %v470 = vpack.c.b16 %v468, %v467
      %vm471 = vcmask 523264
      %v473 = vsel %vm471, %v469, 0
      %v476 = vsel %vm471, %v470, 0
      %v479 = vsel %vm471, %v401, 0
      %v482 = vsel %vm471, %v402, 0
      %v485 = vsel %vm471, %v403, 0
      %v488 = vsel %vm471, %v404, 0
      %v491 = vsel %vm471, %v405, 0
      %v494 = vsel %vm471, %v406, 0
      %v497 = vsel %vm471, %v407, 0
      %v500 = vsel %vm471, %v408, 0
      %v503 = vsel %vm471, %v409, 0
      %v506 = vsel %vm471, %v410, 0
      %v509 = vsel %vm471, %v411, 0
      %v512 = vsel %vm471, %v412, 0
      %v515 = vsel %vm471, %v413, 0
      %v518 = vsel %vm471, %v414, 0
      %v521 = vsel %vm471, %v415, 0
      %v524 = vsel %vm471, %v416, 0
      %v527 = vsel %vm471, %v417, 0
      %v530 = vsel %vm471, %v418, 0
      %v533 = vsel %vm471, %v419, 0
      %v536 = vsel %vm471, %v420, 0
      %v539 = vsel %vm471, %v421, 0
      %v542 = vsel %vm471, %v422, 0
      %v545 = vsel %vm471, %v423, 0
      %v548 = vsel %vm471, %v424, 0
      %v551 = vsel %vm471, %v425, 0
      %v554 = vsel %vm471, %v426, 0
      %v557 = vsel %vm471, %v427, 0
      %v560 = vsel %vm471, %v428, 0
      %v563 = vsel %vm471, %v429, 0
      %v566 = vsel %vm471, %v430, 0
      %v569 = vsel %vm471, %v431, 0
      %v572 = vsel %vm471, %v432, 0
      %574 = vmatprep.subr.bf16.mxu0 0
      %575 = vmatpush1.bf16.xpose.msra.mxu0 %v500
      %576 = vmatprep.subr.bf16.mxu0 0
      %577 = vmatpush1.bf16.xpose.msra.mxu0 %v497
      %578 = vmatprep.subr.bf16.mxu0 0
      %579 = vmatpush1.bf16.xpose.msra.mxu0 %v494
      %580 = vmatprep.subr.bf16.mxu0 0
      %581 = vmatpush1.bf16.xpose.msra.mxu0 %v491
      %582 = vmatprep.subr.bf16.mxu0 0
      %583 = vmatpush1.bf16.xpose.msra.mxu0 %v488
      %584 = vmatprep.subr.bf16.mxu0 0
      %585 = vmatpush1.bf16.xpose.msra.mxu0 %v485
      %586 = vmatprep.subr.bf16.mxu0 0
      %587 = vmatpush1.bf16.xpose.msra.mxu0 %v482
      %588 = vmatprep.subr.bf16.mxu0 0
      %589 = vmatpush1.bf16.xpose.msra.mxu0 %v479
      %590 = vmatprep.subr.bf16.mxu0 0
      %591 = vmatpush2.bf16.xpose.msra.mxu0 %v524
      %592 = vmatprep.subr.bf16.mxu0 0
      %593 = vmatpush2.bf16.xpose.msra.mxu0 %v521
      %594 = vmatprep.subr.bf16.mxu0 0
      %595 = vmatpush2.bf16.xpose.msra.mxu0 %v518
      %596 = vmatprep.subr.bf16.mxu0 0
      %597 = vmatpush2.bf16.xpose.msra.mxu0 %v515
      %598 = vmatprep.subr.bf16.mxu0 0
      %599 = vmatpush2.bf16.xpose.msra.mxu0 %v512
      %600 = vmatprep.subr.bf16.mxu0 0
      %601 = vmatpush2.bf16.xpose.msra.mxu0 %v509
      %602 = vmatprep.subr.bf16.mxu0 0
      %603 = vmatpush2.bf16.xpose.msra.mxu0 %v506
      %604 = vmatprep.subr.bf16.mxu0 0
      %605 = vmatpush2.bf16.xpose.msra.mxu0 %v503
      %606 = vmatprep.mubr.bf16.mxu0 0
      %607 = vmatmul.mubr.bf16.gmra.mxu0 %v473
      %v608 = vpop.f32.mrf.mxu0
      %v609 = vadd.f32 %v444, %v608
      %v610 = vpop.f32.mrf.mxu0
      %v611 = vadd.f32 %v444, %v610
      %v612 = vpop.f32.mrf.mxu0
      %v613 = vadd.f32 %v449, %v612
      %v614 = vpop.f32.mrf.mxu0
      %v615 = vadd.f32 %v449, %v614
      %616 = vmatprep.mubr.bf16.mxu0 0
      %617 = vmatmul.mubr.bf16.gmra.mxu0 %v476
      %v618 = vpop.f32.mrf.mxu0
      %v619 = vadd.f32 %v454, %v618
      %v620 = vpop.f32.mrf.mxu0
      %v621 = vadd.f32 %v454, %v620
      %v622 = vpop.f32.mrf.mxu0
      %v623 = vadd.f32 %v459, %v622
      %v624 = vpop.f32.mrf.mxu0
      %v625 = vadd.f32 %v459, %v624
      %626 = vdwg.mxu0
      %627 = vmatprep.subr.bf16.mxu0 0
      %628 = vmatpush1.bf16.xpose.msra.mxu0 %v548
      %629 = vmatprep.subr.bf16.mxu0 0
      %630 = vmatpush1.bf16.xpose.msra.mxu0 %v545
      %631 = vmatprep.subr.bf16.mxu0 0
      %632 = vmatpush1.bf16.xpose.msra.mxu0 %v542
      %633 = vmatprep.subr.bf16.mxu0 0
      %634 = vmatpush1.bf16.xpose.msra.mxu0 %v539
      %635 = vmatprep.subr.bf16.mxu0 0
      %636 = vmatpush1.bf16.xpose.msra.mxu0 %v536
      %637 = vmatprep.subr.bf16.mxu0 0
      %638 = vmatpush1.bf16.xpose.msra.mxu0 %v533
      %639 = vmatprep.subr.bf16.mxu0 0
      %640 = vmatpush1.bf16.xpose.msra.mxu0 %v530
      %641 = vmatprep.subr.bf16.mxu0 0
      %642 = vmatpush1.bf16.xpose.msra.mxu0 %v527
      %643 = vmatprep.subr.bf16.mxu0 0
      %644 = vmatpush2.bf16.xpose.msra.mxu0 %v572
      %645 = vmatprep.subr.bf16.mxu0 0
      %646 = vmatpush2.bf16.xpose.msra.mxu0 %v569
      %647 = vmatprep.subr.bf16.mxu0 0
      %648 = vmatpush2.bf16.xpose.msra.mxu0 %v566
      %649 = vmatprep.subr.bf16.mxu0 0
      %650 = vmatpush2.bf16.xpose.msra.mxu0 %v563
      %651 = vmatprep.subr.bf16.mxu0 0
      %652 = vmatpush2.bf16.xpose.msra.mxu0 %v560
      %653 = vmatprep.subr.bf16.mxu0 0
      %654 = vmatpush2.bf16.xpose.msra.mxu0 %v557
      %655 = vmatprep.subr.bf16.mxu0 0
      %656 = vmatpush2.bf16.xpose.msra.mxu0 %v554
      %657 = vmatprep.subr.bf16.mxu0 0
      %658 = vmatpush2.bf16.xpose.msra.mxu0 %v551
      %659 = vmatprep.mubr.bf16.mxu0 0
      %660 = vmatmul.mubr.bf16.gmra.mxu0 %v473
      %v661 = vpop.f32.mrf.mxu0
      %v662 = vadd.f32 %v444, %v661
      %v663 = vpop.f32.mrf.mxu0
      %v664 = vadd.f32 %v444, %v663
      %v665 = vpop.f32.mrf.mxu0
      %v666 = vadd.f32 %v449, %v665
      %v667 = vpop.f32.mrf.mxu0
      %v668 = vadd.f32 %v449, %v667
      %669 = vmatprep.mubr.bf16.mxu0 0
      %670 = vmatmul.mubr.bf16.gmra.mxu0 %v476
      %v671 = vpop.f32.mrf.mxu0
      %v672 = vadd.f32 %v454, %v671
      %v673 = vpop.f32.mrf.mxu0
      %v674 = vadd.f32 %v454, %v673
      %v675 = vpop.f32.mrf.mxu0
      %v676 = vadd.f32 %v459, %v675
      %v677 = vpop.f32.mrf.mxu0
      %v678 = vadd.f32 %v459, %v677
      %679 = vdwg.mxu0
      %v680 = vmax.f32 %v609, 0.0
      %v681 = vmax.f32 %v611, 0.0
      %v682 = vmax.f32 %v662, 0.0
      %v683 = vmax.f32 %v664, 0.0
      %v684 = vmax.f32 %v613, 0.0
      %v685 = vmax.f32 %v615, 0.0
      %v686 = vmax.f32 %v666, 0.0
      %v687 = vmax.f32 %v668, 0.0
      %v688 = vmax.f32 %v619, 0.0
      %v689 = vmax.f32 %v621, 0.0
      %v690 = vmax.f32 %v672, 0.0
      %v691 = vmax.f32 %v674, 0.0
      %v692 = vmax.f32 %v623, 0.0
      %v693 = vmax.f32 %v625, 0.0
      %v694 = vmax.f32 %v676, 0.0
      %v695 = vmax.f32 %v678, 0.0
      %v696 = vpack.c.bf16 %v684, %v680
      %v697 = vpack.c.bf16 %v685, %v681
      %v698 = vpack.c.bf16 %v686, %v682
      %v699 = vpack.c.bf16 %v687, %v683
      %v700 = vpack.c.bf16 %v692, %v688
      %v701 = vpack.c.bf16 %v693, %v689
      %v702 = vpack.c.bf16 %v694, %v690
      %v703 = vpack.c.bf16 %v695, %v691
      %v704 = vld [vmem:[%s2] sm:$0xf]
      %v705 = vld [vmem:[%s2 + $0x4] sm:$0xf]
      %v706 = vld [vmem:[%s6] sm:$0xff]
      %v707 = vld [vmem:[%s6 + $0x8] sm:$0xff]
      %709 = vset.pattern.permute.xlu0 0
      %710 = vperm.xlu0 %709, %v706
      %v711 = vpop.permute.xlu0 %710
      %714 = vset.pattern.permute.xlu0 0
      %715 = vperm.xlu0 %714, %v707
      %v716 = vpop.permute.xlu0 %715
      %v720 = vunpack.c.l.b16 %v704
      %v721 = vunpack.c.l.b16 %v705
      %v722 = vpack.c.b16 %v721, %v720
      %vm723 = vcmask 261120
      %v725 = vsel %vm723, %v722, 0
      %727 = vmatprep.subr.bf16.mxu0 0
      %728 = vmatpush1.bf16.msra.mxu0 0
      %729 = vmatprep.subr.bf16.mxu0 0
      %730 = vmatpush1.bf16.msra.mxu0 0
      %731 = vmatprep.subr.bf16.mxu0 0
      %732 = vmatpush1.bf16.msra.mxu0 0
      %733 = vmatprep.subr.bf16.mxu0 0
      %734 = vmatpush1.bf16.msra.mxu0 0
      %735 = vmatprep.subr.bf16.mxu0 0
      %736 = vmatpush1.bf16.msra.mxu0 0
      %737 = vmatprep.subr.bf16.mxu0 0
      %738 = vmatpush1.bf16.msra.mxu0 0
      %739 = vmatprep.subr.bf16.mxu0 %v701
      %740 = vmatpush1.bf16.msra.mxu0 %v700
      %741 = vmatprep.subr.bf16.mxu0 %v697
      %742 = vmatpush1.bf16.msra.mxu0 %v696
      %743 = vmatprep.subr.bf16.mxu0 0
      %744 = vmatpush2.bf16.msra.mxu0 0
      %745 = vmatprep.subr.bf16.mxu0 0
      %746 = vmatpush2.bf16.msra.mxu0 0
      %747 = vmatprep.subr.bf16.mxu0 0
      %748 = vmatpush2.bf16.msra.mxu0 0
      %749 = vmatprep.subr.bf16.mxu0 0
      %750 = vmatpush2.bf16.msra.mxu0 0
      %751 = vmatprep.subr.bf16.mxu0 0
      %752 = vmatpush2.bf16.msra.mxu0 0
      %753 = vmatprep.subr.bf16.mxu0 0
      %754 = vmatpush2.bf16.msra.mxu0 0
      %755 = vmatprep.subr.bf16.mxu0 0
      %756 = vmatpush2.bf16.msra.mxu0 0
      %757 = vmatprep.subr.bf16.mxu0 0
      %758 = vmatpush2.bf16.msra.mxu0 0
      %759 = vmatprep.mubr.bf16.mxu0 0
      %760 = vmatmul.mubr.bf16.gmra.mxu0 %v725
      %v761 = vpop.f32.mrf.mxu0
      %v762 = vadd.f32 %v711, %v761
      %v763 = vpop.f32.mrf.mxu0
      %v764 = vadd.f32 %v711, %v763
      %v765 = vpop.f32.mrf.mxu0
      %v766 = vadd.f32 %v716, %v765
      %v767 = vpop.f32.mrf.mxu0
      %v768 = vadd.f32 %v716, %v767
      %769 = vdwg.mxu0
      %770 = vmatprep.subr.bf16.mxu0 0
      %771 = vmatpush1.bf16.msra.mxu0 0
      %772 = vmatprep.subr.bf16.mxu0 0
      %773 = vmatpush1.bf16.msra.mxu0 0
      %774 = vmatprep.subr.bf16.mxu0 0
      %775 = vmatpush1.bf16.msra.mxu0 0
      %776 = vmatprep.subr.bf16.mxu0 0
      %777 = vmatpush1.bf16.msra.mxu0 0
      %778 = vmatprep.subr.bf16.mxu0 0
      %779 = vmatpush1.bf16.msra.mxu0 0
      %780 = vmatprep.subr.bf16.mxu0 0
      %781 = vmatpush1.bf16.msra.mxu0 0
      %782 = vmatprep.subr.bf16.mxu0 %v703
      %783 = vmatpush1.bf16.msra.mxu0 %v702
      %784 = vmatprep.subr.bf16.mxu0 %v699
      %785 = vmatpush1.bf16.msra.mxu0 %v698
      %786 = vmatprep.subr.bf16.mxu0 0
      %787 = vmatpush2.bf16.msra.mxu0 0
      %788 = vmatprep.subr.bf16.mxu0 0
      %789 = vmatpush2.bf16.msra.mxu0 0
      %790 = vmatprep.subr.bf16.mxu0 0
      %791 = vmatpush2.bf16.msra.mxu0 0
      %792 = vmatprep.subr.bf16.mxu0 0
      %793 = vmatpush2.bf16.msra.mxu0 0
      %794 = vmatprep.subr.bf16.mxu0 0
      %795 = vmatpush2.bf16.msra.mxu0 0
      %796 = vmatprep.subr.bf16.mxu0 0
      %797 = vmatpush2.bf16.msra.mxu0 0
      %798 = vmatprep.subr.bf16.mxu0 0
      %799 = vmatpush2.bf16.msra.mxu0 0
      %800 = vmatprep.subr.bf16.mxu0 0
      %801 = vmatpush2.bf16.msra.mxu0 0
      %802 = vmatprep.mubr.bf16.mxu0 0
      %803 = vmatmul.mubr.bf16.gmra.mxu0 %v725
      %v804 = vpop.f32.mrf.mxu0
      %v805 = vadd.f32 %v711, %v804
      %v806 = vpop.f32.mrf.mxu0
      %v807 = vadd.f32 %v711, %v806
      %v808 = vpop.f32.mrf.mxu0
      %v809 = vadd.f32 %v716, %v808
      %v810 = vpop.f32.mrf.mxu0
      %v811 = vadd.f32 %v716, %v810
      %812 = vdwg.mxu0
      %v813 = vmax.f32 %v762, 0.0
      %v814 = vmax.f32 %v764, 0.0
      %v815 = vmax.f32 %v805, 0.0
      %v816 = vmax.f32 %v807, 0.0
      %v817 = vmax.f32 %v766, 0.0
      %v818 = vmax.f32 %v768, 0.0
      %v819 = vmax.f32 %v809, 0.0
      %v820 = vmax.f32 %v811, 0.0
      %v821 = vpack.c.bf16 %v817, %v813
      %v822 = vpack.c.bf16 %v818, %v814
      %v823 = vpack.c.bf16 %v819, %v815
      %v824 = vpack.c.bf16 %v820, %v816
      %v825 = vld [vmem:[%s3] sm:$0xf]
      %v826 = vld [vmem:[%s3 + $0x4] sm:$0xf]
      %v827 = vld [vmem:[%s3 + $0x8] sm:$0xf]
      %v828 = vld [vmem:[%s3 + $0xc] sm:$0xf]
      %v829 = vld [vmem:[%s7] sm:$0xff]
      %v830 = vld [vmem:[%s7 + $0x8] sm:$0xff]
      %v831 = vld [vmem:[%s7 + $0x10] sm:$0xff]
      %v832 = vld [vmem:[%s7 + $0x18] sm:$0xff]
      %834 = vset.pattern.permute.xlu0 0
      %835 = vperm.xlu0 %834, %v829
      %v836 = vpop.permute.xlu0 %835
      %839 = vset.pattern.permute.xlu0 0
      %840 = vperm.xlu0 %839, %v830
      %v841 = vpop.permute.xlu0 %840
      %844 = vset.pattern.permute.xlu0 0
      %845 = vperm.xlu0 %844, %v831
      %v846 = vpop.permute.xlu0 %845
      %849 = vset.pattern.permute.xlu0 0
      %850 = vperm.xlu0 %849, %v832
      %v851 = vpop.permute.xlu0 %850
      %v857 = vunpack.c.l.b16 %v825
      %v858 = vunpack.c.l.b16 %v826
      %v859 = vunpack.c.l.b16 %v827
      %v860 = vunpack.c.l.b16 %v828
      %v861 = vpack.c.b16 %v858, %v857
      %v862 = vpack.c.b16 %v860, %v859
      %vm863 = vcmask 130048
      %v865 = vsel %vm863, %v861, 0
      %v868 = vsel %vm863, %v862, 0
      %870 = vmatprep.subr.bf16.mxu0 0
      %871 = vmatpush1.bf16.msra.mxu0 0
      %872 = vmatprep.subr.bf16.mxu0 0
      %873 = vmatpush1.bf16.msra.mxu0 0
      %874 = vmatprep.subr.bf16.mxu0 0
      %875 = vmatpush1.bf16.msra.mxu0 0
      %876 = vmatprep.subr.bf16.mxu0 0
      %877 = vmatpush1.bf16.msra.mxu0 0
      %878 = vmatprep.subr.bf16.mxu0 0
      %879 = vmatpush1.bf16.msra.mxu0 0
      %880 = vmatprep.subr.bf16.mxu0 0
      %881 = vmatpush1.bf16.msra.mxu0 0
      %882 = vmatprep.subr.bf16.mxu0 0
      %883 = vmatpush1.bf16.msra.mxu0 0
      %884 = vmatprep.subr.bf16.mxu0 %v822
      %885 = vmatpush1.bf16.msra.mxu0 %v821
      %886 = vmatprep.subr.bf16.mxu0 0
      %887 = vmatpush2.bf16.msra.mxu0 0
      %888 = vmatprep.subr.bf16.mxu0 0
      %889 = vmatpush2.bf16.msra.mxu0 0
      %890 = vmatprep.subr.bf16.mxu0 0
      %891 = vmatpush2.bf16.msra.mxu0 0
      %892 = vmatprep.subr.bf16.mxu0 0
      %893 = vmatpush2.bf16.msra.mxu0 0
      %894 = vmatprep.subr.bf16.mxu0 0
      %895 = vmatpush2.bf16.msra.mxu0 0
      %896 = vmatprep.subr.bf16.mxu0 0
      %897 = vmatpush2.bf16.msra.mxu0 0
      %898 = vmatprep.subr.bf16.mxu0 0
      %899 = vmatpush2.bf16.msra.mxu0 0
      %900 = vmatprep.subr.bf16.mxu0 0
      %901 = vmatpush2.bf16.msra.mxu0 0
      %902 = vmatprep.mubr.bf16.mxu0 0
      %903 = vmatmul.mubr.bf16.gmra.mxu0 %v865
      %v904 = vpop.f32.mrf.mxu0
      %v905 = vadd.f32 %v836, %v904
      %v906 = vpop.f32.mrf.mxu0
      %v907 = vadd.f32 %v836, %v906
      %v908 = vpop.f32.mrf.mxu0
      %v909 = vadd.f32 %v841, %v908
      %v910 = vpop.f32.mrf.mxu0
      %v911 = vadd.f32 %v841, %v910
      %912 = vmatprep.mubr.bf16.mxu0 0
      %913 = vmatmul.mubr.bf16.gmra.mxu0 %v868
      %v914 = vpop.f32.mrf.mxu0
      %v915 = vadd.f32 %v846, %v914
      %v916 = vpop.f32.mrf.mxu0
      %v917 = vadd.f32 %v846, %v916
      %v918 = vpop.f32.mrf.mxu0
      %v919 = vadd.f32 %v851, %v918
      %v920 = vpop.f32.mrf.mxu0
      %v921 = vadd.f32 %v851, %v920
      %922 = vdwg.mxu0
      %923 = vmatprep.subr.bf16.mxu0 0
      %924 = vmatpush1.bf16.msra.mxu0 0
      %925 = vmatprep.subr.bf16.mxu0 0
      %926 = vmatpush1.bf16.msra.mxu0 0
      %927 = vmatprep.subr.bf16.mxu0 0
      %928 = vmatpush1.bf16.msra.mxu0 0
      %929 = vmatprep.subr.bf16.mxu0 0
      %930 = vmatpush1.bf16.msra.mxu0 0
      %931 = vmatprep.subr.bf16.mxu0 0
      %932 = vmatpush1.bf16.msra.mxu0 0
      %933 = vmatprep.subr.bf16.mxu0 0
      %934 = vmatpush1.bf16.msra.mxu0 0
      %935 = vmatprep.subr.bf16.mxu0 0
      %936 = vmatpush1.bf16.msra.mxu0 0
      %937 = vmatprep.subr.bf16.mxu0 %v824
      %938 = vmatpush1.bf16.msra.mxu0 %v823
      %939 = vmatprep.subr.bf16.mxu0 0
      %940 = vmatpush2.bf16.msra.mxu0 0
      %941 = vmatprep.subr.bf16.mxu0 0
      %942 = vmatpush2.bf16.msra.mxu0 0
      %943 = vmatprep.subr.bf16.mxu0 0
      %944 = vmatpush2.bf16.msra.mxu0 0
      %945 = vmatprep.subr.bf16.mxu0 0
      %946 = vmatpush2.bf16.msra.mxu0 0
      %947 = vmatprep.subr.bf16.mxu0 0
      %948 = vmatpush2.bf16.msra.mxu0 0
      %949 = vmatprep.subr.bf16.mxu0 0
      %950 = vmatpush2.bf16.msra.mxu0 0
      %951 = vmatprep.subr.bf16.mxu0 0
      %952 = vmatpush2.bf16.msra.mxu0 0
      %953 = vmatprep.subr.bf16.mxu0 0
      %954 = vmatpush2.bf16.msra.mxu0 0
      %955 = vmatprep.mubr.bf16.mxu0 0
      %956 = vmatmul.mubr.bf16.gmra.mxu0 %v865
      %v957 = vpop.f32.mrf.mxu0
      %v958 = vadd.f32 %v836, %v957
      %v959 = vpop.f32.mrf.mxu0
      %v960 = vadd.f32 %v836, %v959
      %v961 = vpop.f32.mrf.mxu0
      %v962 = vadd.f32 %v841, %v961
      %v963 = vpop.f32.mrf.mxu0
      %v964 = vadd.f32 %v841, %v963
      %965 = vmatprep.mubr.bf16.mxu0 0
      %966 = vmatmul.mubr.bf16.gmra.mxu0 %v868
      %v967 = vpop.f32.mrf.mxu0
      %v968 = vadd.f32 %v846, %v967
      %v969 = vpop.f32.mrf.mxu0
      %v970 = vadd.f32 %v846, %v969
      %v971 = vpop.f32.mrf.mxu0
      %v972 = vadd.f32 %v851, %v971
      %v973 = vpop.f32.mrf.mxu0
      %v974 = vadd.f32 %v851, %v973
      %975 = vdwg.mxu0
      %v976 = vmax.f32 %v905, 0.0
      %v977 = vmax.f32 %v907, 0.0
      %v978 = vmax.f32 %v958, 0.0
      %v979 = vmax.f32 %v960, 0.0
      %v980 = vmax.f32 %v909, 0.0
      %v981 = vmax.f32 %v911, 0.0
      %v982 = vmax.f32 %v962, 0.0
      %v983 = vmax.f32 %v964, 0.0
      %v984 = vmax.f32 %v915, 0.0
      %v985 = vmax.f32 %v917, 0.0
      %v986 = vmax.f32 %v968, 0.0
      %v987 = vmax.f32 %v970, 0.0
      %v988 = vmax.f32 %v919, 0.0
      %v989 = vmax.f32 %v921, 0.0
      %v990 = vmax.f32 %v972, 0.0
      %v991 = vmax.f32 %v974, 0.0
      %v992 = vpack.c.bf16 %v980, %v976
      %v993 = vpack.c.bf16 %v981, %v977
      %v994 = vpack.c.bf16 %v982, %v978
      %v995 = vpack.c.bf16 %v983, %v979
      %v996 = vpack.c.bf16 %v988, %v984
      %v997 = vpack.c.bf16 %v989, %v985
      %v998 = vpack.c.bf16 %v990, %v986
      %v999 = vpack.c.bf16 %v991, %v987
      %v1000 = vld [vmem:[%s4] sm:$0xf]
      %v1001 = vld [vmem:[%s4 + $0x4] sm:$0xf]
      %v1002 = vld [vmem:[%s4 + $0x8] sm:$0xf]
      %v1003 = vld [vmem:[%s4 + $0xc] sm:$0xf]
      %v1004 = vld [vmem:[%s4 + $0x10] sm:$0xf]
      %v1005 = vld [vmem:[%s4 + $0x14] sm:$0xf]
      %v1006 = vld [vmem:[%s4 + $0x18] sm:$0xf]
      %v1007 = vld [vmem:[%s4 + $0x1c] sm:$0xf]
      %v1008 = vld [vmem:[%s8] sm:$0x1]
      %v1010 = vlaneseq
      %v1011 = vshrl.u32 %v1010, 7
      %v1012 = vsub.s32 0, %v1011
      %v1013 = vrot.slane %v1008, %v1012
      %1015 = vxpose.xlu0.c.b16.start [1/8] %v992, 128
      %1016 = vxpose.xlu0.c.b16.cont [2/8] %v996, 128
      %1017 = vxpose.xlu0.c.b16.cont [3/8] 0, 128
      %1018 = vxpose.xlu0.c.b16.cont [4/8] 0, 128
      %1019 = vxpose.xlu0.c.b16.cont [5/8] 0, 128
      %1020 = vxpose.xlu0.c.b16.cont [6/8] 0, 128
      %1021 = vxpose.xlu0.c.b16.cont [7/8] 0, 128
      %1022 = vxpose.xlu0.c.b16.end [8/8] 0, 128
      %v1023 = vpop.trf.xlu0
      %v1024 = vpop.trf.xlu0
      %v1025 = vpop.trf.xlu0
      %v1026 = vpop.trf.xlu0
      %v1027 = vpop.trf.xlu0
      %v1028 = vpop.trf.xlu0
      %v1029 = vpop.trf.xlu0
      %v1030 = vpop.trf.xlu0
      %1031 = vxpose.xlu0.c.b16.start [1/8] %v993, 128
      %1032 = vxpose.xlu0.c.b16.cont [2/8] %v997, 128
      %1033 = vxpose.xlu0.c.b16.cont [3/8] 0, 128
      %1034 = vxpose.xlu0.c.b16.cont [4/8] 0, 128
      %1035 = vxpose.xlu0.c.b16.cont [5/8] 0, 128
      %1036 = vxpose.xlu0.c.b16.cont [6/8] 0, 128
      %1037 = vxpose.xlu0.c.b16.cont [7/8] 0, 128
      %1038 = vxpose.xlu0.c.b16.end [8/8] 0, 128
      %v1039 = vpop.trf.xlu0
      %v1040 = vpop.trf.xlu0
      %v1041 = vpop.trf.xlu0
      %v1042 = vpop.trf.xlu0
      %v1043 = vpop.trf.xlu0
      %v1044 = vpop.trf.xlu0
      %v1045 = vpop.trf.xlu0
      %v1046 = vpop.trf.xlu0
      %1047 = vxpose.xlu0.c.b16.start [1/8] %v994, 128
      %1048 = vxpose.xlu0.c.b16.cont [2/8] %v998, 128
      %1049 = vxpose.xlu0.c.b16.cont [3/8] 0, 128
      %1050 = vxpose.xlu0.c.b16.cont [4/8] 0, 128
      %1051 = vxpose.xlu0.c.b16.cont [5/8] 0, 128
      %1052 = vxpose.xlu0.c.b16.cont [6/8] 0, 128
      %1053 = vxpose.xlu0.c.b16.cont [7/8] 0, 128
      %1054 = vxpose.xlu0.c.b16.end [8/8] 0, 128
      %v1055 = vpop.trf.xlu0
      %v1056 = vpop.trf.xlu0
      %v1057 = vpop.trf.xlu0
      %v1058 = vpop.trf.xlu0
      %v1059 = vpop.trf.xlu0
      %v1060 = vpop.trf.xlu0
      %v1061 = vpop.trf.xlu0
      %v1062 = vpop.trf.xlu0
      %1063 = vxpose.xlu0.c.b16.start [1/8] %v995, 128
      %1064 = vxpose.xlu0.c.b16.cont [2/8] %v999, 128
      %1065 = vxpose.xlu0.c.b16.cont [3/8] 0, 128
      %1066 = vxpose.xlu0.c.b16.cont [4/8] 0, 128
      %1067 = vxpose.xlu0.c.b16.cont [5/8] 0, 128
      %1068 = vxpose.xlu0.c.b16.cont [6/8] 0, 128
      %1069 = vxpose.xlu0.c.b16.cont [7/8] 0, 128
      %1070 = vxpose.xlu0.c.b16.end [8/8] 0, 128
      %v1071 = vpop.trf.xlu0
      %v1072 = vpop.trf.xlu0
      %v1073 = vpop.trf.xlu0
      %v1074 = vpop.trf.xlu0
      %v1075 = vpop.trf.xlu0
      %v1076 = vpop.trf.xlu0
      %v1077 = vpop.trf.xlu0
      %v1078 = vpop.trf.xlu0
      %v1087 = vunpack.c.l.b16 %v1000
      %v1088 = vunpack.c.l.b16 %v1001
      %v1089 = vunpack.c.l.b16 %v1002
      %v1090 = vunpack.c.l.b16 %v1003
      %v1091 = vunpack.c.l.b16 %v1004
      %v1092 = vunpack.c.l.b16 %v1005
      %v1093 = vunpack.c.l.b16 %v1006
      %v1094 = vunpack.c.l.b16 %v1007
      %v1095 = vpack.c.b16 %v1088, %v1087
      %v1096 = vpack.c.b16 %v1090, %v1089
      %v1097 = vpack.c.b16 %v1092, %v1091
      %v1098 = vpack.c.b16 %v1094, %v1093
      %v1100 = vsel %vm723, %v1023, 0
      %v1103 = vsel %vm723, %v1024, 0
      %v1106 = vsel %vm723, %v1025, 0
      %v1109 = vsel %vm723, %v1026, 0
      %v1112 = vsel %vm723, %v1027, 0
      %v1115 = vsel %vm723, %v1028, 0
      %v1118 = vsel %vm723, %v1029, 0
      %v1121 = vsel %vm723, %v1030, 0
      %v1124 = vsel %vm723, %v1039, 0
      %v1127 = vsel %vm723, %v1040, 0
      %v1130 = vsel %vm723, %v1041, 0
      %v1133 = vsel %vm723, %v1042, 0
      %v1136 = vsel %vm723, %v1043, 0
      %v1139 = vsel %vm723, %v1044, 0
      %v1142 = vsel %vm723, %v1045, 0
      %v1145 = vsel %vm723, %v1046, 0
      %v1148 = vsel %vm723, %v1055, 0
      %v1151 = vsel %vm723, %v1056, 0
      %v1154 = vsel %vm723, %v1057, 0
      %v1157 = vsel %vm723, %v1058, 0
      %v1160 = vsel %vm723, %v1059, 0
      %v1163 = vsel %vm723, %v1060, 0
      %v1166 = vsel %vm723, %v1061, 0
      %v1169 = vsel %vm723, %v1062, 0
      %v1172 = vsel %vm723, %v1071, 0
      %v1175 = vsel %vm723, %v1072, 0
      %v1178 = vsel %vm723, %v1073, 0
      %v1181 = vsel %vm723, %v1074, 0
      %v1184 = vsel %vm723, %v1075, 0
      %v1187 = vsel %vm723, %v1076, 0
      %v1190 = vsel %vm723, %v1077, 0
      %v1193 = vsel %vm723, %v1078, 0
      %v1196 = vsel %vm723, %v1095, 0
      %v1199 = vsel %vm723, %v1096, 0
      %v1202 = vsel %vm723, %v1097, 0
      %v1205 = vsel %vm723, %v1098, 0
      %1207 = vmatprep.subr.bf16.mxu0 0
      %1208 = vmatpush1.bf16.xpose.msra.mxu0 0
      %1209 = vmatprep.subr.bf16.mxu0 0
      %1210 = vmatpush1.bf16.xpose.msra.mxu0 0
      %1211 = vmatprep.subr.bf16.mxu0 0
      %1212 = vmatpush1.bf16.xpose.msra.mxu0 0
      %1213 = vmatprep.subr.bf16.mxu0 0
      %1214 = vmatpush1.bf16.xpose.msra.mxu0 0
      %1215 = vmatprep.subr.bf16.mxu0 0
      %1216 = vmatpush1.bf16.xpose.msra.mxu0 %v1205
      %1217 = vmatprep.subr.bf16.mxu0 0
      %1218 = vmatpush1.bf16.xpose.msra.mxu0 %v1202
      %1219 = vmatprep.subr.bf16.mxu0 0
      %1220 = vmatpush1.bf16.xpose.msra.mxu0 %v1199
      %1221 = vmatprep.subr.bf16.mxu0 0
      %1222 = vmatpush1.bf16.xpose.msra.mxu0 %v1196
      %1223 = vmatprep.subr.bf16.mxu0 0
      %1224 = vmatpush2.bf16.xpose.msra.mxu0 0
      %1225 = vmatprep.subr.bf16.mxu0 0
      %1226 = vmatpush2.bf16.xpose.msra.mxu0 0
      %1227 = vmatprep.subr.bf16.mxu0 0
      %1228 = vmatpush2.bf16.xpose.msra.mxu0 0
      %1229 = vmatprep.subr.bf16.mxu0 0
      %1230 = vmatpush2.bf16.xpose.msra.mxu0 0
      %1231 = vmatprep.subr.bf16.mxu0 0
      %1232 = vmatpush2.bf16.xpose.msra.mxu0 0
      %1233 = vmatprep.subr.bf16.mxu0 0
      %1234 = vmatpush2.bf16.xpose.msra.mxu0 0
      %1235 = vmatprep.subr.bf16.mxu0 0
      %1236 = vmatpush2.bf16.xpose.msra.mxu0 0
      %1237 = vmatprep.subr.bf16.mxu0 0
      %1238 = vmatpush2.bf16.xpose.msra.mxu0 0
      %1239 = vmatprep.mubr.bf16.mxu0 0
      %1240 = vmatmul.mubr.bf16.gmra.mxu0 %v1100
      %v1241 = vpop.f32.mrf.mxu0
      %v1242 = vadd.f32 %v1013, %v1241
      %v1243 = vpop.f32.mrf.mxu0
      %v1244 = vpop.f32.mrf.mxu0
      %v1245 = vadd.f32 %v1013, %v1244
      %v1246 = vpop.f32.mrf.mxu0
      %1247 = vmatprep.mubr.bf16.mxu0 0
      %1248 = vmatmul.mubr.bf16.gmra.mxu0 %v1103
      %v1249 = vpop.f32.mrf.mxu0
      %v1250 = vadd.f32 %v1013, %v1249
      %v1251 = vpop.f32.mrf.mxu0
      %v1252 = vpop.f32.mrf.mxu0
      %v1253 = vadd.f32 %v1013, %v1252
      %v1254 = vpop.f32.mrf.mxu0
      %1255 = vmatprep.mubr.bf16.mxu0 0
      %1256 = vmatmul.mubr.bf16.gmra.mxu0 %v1106
      %v1257 = vpop.f32.mrf.mxu0
      %v1258 = vadd.f32 %v1013, %v1257
      %v1259 = vpop.f32.mrf.mxu0
      %v1260 = vpop.f32.mrf.mxu0
      %v1261 = vadd.f32 %v1013, %v1260
      %v1262 = vpop.f32.mrf.mxu0
      %1263 = vmatprep.mubr.bf16.mxu0 0
      %1264 = vmatmul.mubr.bf16.gmra.mxu0 %v1109
      %v1265 = vpop.f32.mrf.mxu0
      %v1266 = vadd.f32 %v1013, %v1265
      %v1267 = vpop.f32.mrf.mxu0
      %v1268 = vpop.f32.mrf.mxu0
      %v1269 = vadd.f32 %v1013, %v1268
      %v1270 = vpop.f32.mrf.mxu0
      %1271 = vmatprep.mubr.bf16.mxu0 0
      %1272 = vmatmul.mubr.bf16.gmra.mxu0 %v1112
      %v1273 = vpop.f32.mrf.mxu0
      %v1274 = vadd.f32 %v1013, %v1273
      %v1275 = vpop.f32.mrf.mxu0
      %v1276 = vpop.f32.mrf.mxu0
      %v1277 = vadd.f32 %v1013, %v1276
      %v1278 = vpop.f32.mrf.mxu0
      %1279 = vmatprep.mubr.bf16.mxu0 0
      %1280 = vmatmul.mubr.bf16.gmra.mxu0 %v1115
      %v1281 = vpop.f32.mrf.mxu0
      %v1282 = vadd.f32 %v1013, %v1281
      %v1283 = vpop.f32.mrf.mxu0
      %v1284 = vpop.f32.mrf.mxu0
      %v1285 = vadd.f32 %v1013, %v1284
      %v1286 = vpop.f32.mrf.mxu0
      %1287 = vmatprep.mubr.bf16.mxu0 0
      %1288 = vmatmul.mubr.bf16.gmra.mxu0 %v1118
      %v1289 = vpop.f32.mrf.mxu0
      %v1290 = vadd.f32 %v1013, %v1289
      %v1291 = vpop.f32.mrf.mxu0
      %v1292 = vpop.f32.mrf.mxu0
      %v1293 = vadd.f32 %v1013, %v1292
      %v1294 = vpop.f32.mrf.mxu0
      %1295 = vmatprep.mubr.bf16.mxu0 0
      %1296 = vmatmul.mubr.bf16.gmra.mxu0 %v1121
      %v1297 = vpop.f32.mrf.mxu0
      %v1298 = vadd.f32 %v1013, %v1297
      %v1299 = vpop.f32.mrf.mxu0
      %v1300 = vpop.f32.mrf.mxu0
      %v1301 = vadd.f32 %v1013, %v1300
      %v1302 = vpop.f32.mrf.mxu0
      %1303 = vmatprep.mubr.bf16.mxu0 0
      %1304 = vmatmul.mubr.bf16.gmra.mxu0 %v1124
      %v1305 = vpop.f32.mrf.mxu0
      %v1306 = vadd.f32 %v1013, %v1305
      %v1307 = vpop.f32.mrf.mxu0
      %v1308 = vpop.f32.mrf.mxu0
      %v1309 = vadd.f32 %v1013, %v1308
      %v1310 = vpop.f32.mrf.mxu0
      %1311 = vmatprep.mubr.bf16.mxu0 0
      %1312 = vmatmul.mubr.bf16.gmra.mxu0 %v1127
      %v1313 = vpop.f32.mrf.mxu0
      %v1314 = vadd.f32 %v1013, %v1313
      %v1315 = vpop.f32.mrf.mxu0
      %v1316 = vpop.f32.mrf.mxu0
      %v1317 = vadd.f32 %v1013, %v1316
      %v1318 = vpop.f32.mrf.mxu0
      %1319 = vmatprep.mubr.bf16.mxu0 0
      %1320 = vmatmul.mubr.bf16.gmra.mxu0 %v1130
      %v1321 = vpop.f32.mrf.mxu0
      %v1322 = vadd.f32 %v1013, %v1321
      %v1323 = vpop.f32.mrf.mxu0
      %v1324 = vpop.f32.mrf.mxu0
      %v1325 = vadd.f32 %v1013, %v1324
      %v1326 = vpop.f32.mrf.mxu0
      %1327 = vmatprep.mubr.bf16.mxu0 0
      %1328 = vmatmul.mubr.bf16.gmra.mxu0 %v1133
      %v1329 = vpop.f32.mrf.mxu0
      %v1330 = vadd.f32 %v1013, %v1329
      %v1331 = vpop.f32.mrf.mxu0
      %v1332 = vpop.f32.mrf.mxu0
      %v1333 = vadd.f32 %v1013, %v1332
      %v1334 = vpop.f32.mrf.mxu0
      %1335 = vmatprep.mubr.bf16.mxu0 0
      %1336 = vmatmul.mubr.bf16.gmra.mxu0 %v1136
      %v1337 = vpop.f32.mrf.mxu0
      %v1338 = vadd.f32 %v1013, %v1337
      %v1339 = vpop.f32.mrf.mxu0
      %v1340 = vpop.f32.mrf.mxu0
      %v1341 = vadd.f32 %v1013, %v1340
      %v1342 = vpop.f32.mrf.mxu0
      %1343 = vmatprep.mubr.bf16.mxu0 0
      %1344 = vmatmul.mubr.bf16.gmra.mxu0 %v1139
      %v1345 = vpop.f32.mrf.mxu0
      %v1346 = vadd.f32 %v1013, %v1345
      %v1347 = vpop.f32.mrf.mxu0
      %v1348 = vpop.f32.mrf.mxu0
      %v1349 = vadd.f32 %v1013, %v1348
      %v1350 = vpop.f32.mrf.mxu0
      %1351 = vmatprep.mubr.bf16.mxu0 0
      %1352 = vmatmul.mubr.bf16.gmra.mxu0 %v1142
      %v1353 = vpop.f32.mrf.mxu0
      %v1354 = vadd.f32 %v1013, %v1353
      %v1355 = vpop.f32.mrf.mxu0
      %v1356 = vpop.f32.mrf.mxu0
      %v1357 = vadd.f32 %v1013, %v1356
      %v1358 = vpop.f32.mrf.mxu0
      %1359 = vmatprep.mubr.bf16.mxu0 0
      %1360 = vmatmul.mubr.bf16.gmra.mxu0 %v1145
      %v1361 = vpop.f32.mrf.mxu0
      %v1362 = vadd.f32 %v1013, %v1361
      %v1363 = vpop.f32.mrf.mxu0
      %v1364 = vpop.f32.mrf.mxu0
      %v1365 = vadd.f32 %v1013, %v1364
      %v1366 = vpop.f32.mrf.mxu0
      %1367 = vmatprep.mubr.bf16.mxu0 0
      %1368 = vmatmul.mubr.bf16.gmra.mxu0 %v1148
      %v1369 = vpop.f32.mrf.mxu0
      %v1370 = vadd.f32 %v1013, %v1369
      %v1371 = vpop.f32.mrf.mxu0
      %v1372 = vpop.f32.mrf.mxu0
      %v1373 = vadd.f32 %v1013, %v1372
      %v1374 = vpop.f32.mrf.mxu0
      %1375 = vmatprep.mubr.bf16.mxu0 0
      %1376 = vmatmul.mubr.bf16.gmra.mxu0 %v1151
      %v1377 = vpop.f32.mrf.mxu0
      %v1378 = vadd.f32 %v1013, %v1377
      %v1379 = vpop.f32.mrf.mxu0
      %v1380 = vpop.f32.mrf.mxu0
      %v1381 = vadd.f32 %v1013, %v1380
      %v1382 = vpop.f32.mrf.mxu0
      %1383 = vmatprep.mubr.bf16.mxu0 0
      %1384 = vmatmul.mubr.bf16.gmra.mxu0 %v1154
      %v1385 = vpop.f32.mrf.mxu0
      %v1386 = vadd.f32 %v1013, %v1385
      %v1387 = vpop.f32.mrf.mxu0
      %v1388 = vpop.f32.mrf.mxu0
      %v1389 = vadd.f32 %v1013, %v1388
      %v1390 = vpop.f32.mrf.mxu0
      %1391 = vmatprep.mubr.bf16.mxu0 0
      %1392 = vmatmul.mubr.bf16.gmra.mxu0 %v1157
      %v1393 = vpop.f32.mrf.mxu0
      %v1394 = vadd.f32 %v1013, %v1393
      %v1395 = vpop.f32.mrf.mxu0
      %v1396 = vpop.f32.mrf.mxu0
      %v1397 = vadd.f32 %v1013, %v1396
      %v1398 = vpop.f32.mrf.mxu0
      %1399 = vmatprep.mubr.bf16.mxu0 0
      %1400 = vmatmul.mubr.bf16.gmra.mxu0 %v1160
      %v1401 = vpop.f32.mrf.mxu0
      %v1402 = vadd.f32 %v1013, %v1401
      %v1403 = vpop.f32.mrf.mxu0
      %v1404 = vpop.f32.mrf.mxu0
      %v1405 = vadd.f32 %v1013, %v1404
      %v1406 = vpop.f32.mrf.mxu0
      %1407 = vmatprep.mubr.bf16.mxu0 0
      %1408 = vmatmul.mubr.bf16.gmra.mxu0 %v1163
      %v1409 = vpop.f32.mrf.mxu0
      %v1410 = vadd.f32 %v1013, %v1409
      %v1411 = vpop.f32.mrf.mxu0
      %v1412 = vpop.f32.mrf.mxu0
      %v1413 = vadd.f32 %v1013, %v1412
      %v1414 = vpop.f32.mrf.mxu0
      %1415 = vmatprep.mubr.bf16.mxu0 0
      %1416 = vmatmul.mubr.bf16.gmra.mxu0 %v1166
      %v1417 = vpop.f32.mrf.mxu0
      %v1418 = vadd.f32 %v1013, %v1417
      %v1419 = vpop.f32.mrf.mxu0
      %v1420 = vpop.f32.mrf.mxu0
      %v1421 = vadd.f32 %v1013, %v1420
      %v1422 = vpop.f32.mrf.mxu0
      %1423 = vmatprep.mubr.bf16.mxu0 0
      %1424 = vmatmul.mubr.bf16.gmra.mxu0 %v1169
      %v1425 = vpop.f32.mrf.mxu0
      %v1426 = vadd.f32 %v1013, %v1425
      %v1427 = vpop.f32.mrf.mxu0
      %v1428 = vpop.f32.mrf.mxu0
      %v1429 = vadd.f32 %v1013, %v1428
      %v1430 = vpop.f32.mrf.mxu0
      %1431 = vmatprep.mubr.bf16.mxu0 0
      %1432 = vmatmul.mubr.bf16.gmra.mxu0 %v1172
      %v1433 = vpop.f32.mrf.mxu0
      %v1434 = vadd.f32 %v1013, %v1433
      %v1435 = vpop.f32.mrf.mxu0
      %v1436 = vpop.f32.mrf.mxu0
      %v1437 = vadd.f32 %v1013, %v1436
      %v1438 = vpop.f32.mrf.mxu0
      %1439 = vmatprep.mubr.bf16.mxu0 0
      %1440 = vmatmul.mubr.bf16.gmra.mxu0 %v1175
      %v1441 = vpop.f32.mrf.mxu0
      %v1442 = vadd.f32 %v1013, %v1441
      %v1443 = vpop.f32.mrf.mxu0
      %v1444 = vpop.f32.mrf.mxu0
      %v1445 = vadd.f32 %v1013, %v1444
      %v1446 = vpop.f32.mrf.mxu0
      %1447 = vmatprep.mubr.bf16.mxu0 0
      %1448 = vmatmul.mubr.bf16.gmra.mxu0 %v1178
      %v1449 = vpop.f32.mrf.mxu0
      %v1450 = vadd.f32 %v1013, %v1449
      %v1451 = vpop.f32.mrf.mxu0
      %v1452 = vpop.f32.mrf.mxu0
      %v1453 = vadd.f32 %v1013, %v1452
      %v1454 = vpop.f32.mrf.mxu0
      %1455 = vmatprep.mubr.bf16.mxu0 0
      %1456 = vmatmul.mubr.bf16.gmra.mxu0 %v1181
      %v1457 = vpop.f32.mrf.mxu0
      %v1458 = vadd.f32 %v1013, %v1457
      %v1459 = vpop.f32.mrf.mxu0
      %v1460 = vpop.f32.mrf.mxu0
      %v1461 = vadd.f32 %v1013, %v1460
      %v1462 = vpop.f32.mrf.mxu0
      %1463 = vmatprep.mubr.bf16.mxu0 0
      %1464 = vmatmul.mubr.bf16.gmra.mxu0 %v1184
      %v1465 = vpop.f32.mrf.mxu0
      %v1466 = vadd.f32 %v1013, %v1465
      %v1467 = vpop.f32.mrf.mxu0
      %v1468 = vpop.f32.mrf.mxu0
      %v1469 = vadd.f32 %v1013, %v1468
      %v1470 = vpop.f32.mrf.mxu0
      %1471 = vmatprep.mubr.bf16.mxu0 0
      %1472 = vmatmul.mubr.bf16.gmra.mxu0 %v1187
      %v1473 = vpop.f32.mrf.mxu0
      %v1474 = vadd.f32 %v1013, %v1473
      %v1475 = vpop.f32.mrf.mxu0
      %v1476 = vpop.f32.mrf.mxu0
      %v1477 = vadd.f32 %v1013, %v1476
      %v1478 = vpop.f32.mrf.mxu0
      %1479 = vmatprep.mubr.bf16.mxu0 0
      %1480 = vmatmul.mubr.bf16.gmra.mxu0 %v1190
      %v1481 = vpop.f32.mrf.mxu0
      %v1482 = vadd.f32 %v1013, %v1481
      %v1483 = vpop.f32.mrf.mxu0
      %v1484 = vpop.f32.mrf.mxu0
      %v1485 = vadd.f32 %v1013, %v1484
      %v1486 = vpop.f32.mrf.mxu0
      %1487 = vmatprep.mubr.bf16.mxu0 0
      %1488 = vmatmul.mubr.bf16.gmra.mxu0 %v1193
      %v1489 = vpop.f32.mrf.mxu0
      %v1490 = vadd.f32 %v1013, %v1489
      %v1491 = vpop.f32.mrf.mxu0
      %v1492 = vpop.f32.mrf.mxu0
      %v1493 = vadd.f32 %v1013, %v1492
      %v1494 = vpop.f32.mrf.mxu0
      %1495 = vdwg.mxu0
      %v1496 = vmax.f32 %v1242, 0.0
      %v1497 = vmax.f32 %v1245, 0.0
      %v1498 = vmax.f32 %v1250, 0.0
      %v1499 = vmax.f32 %v1253, 0.0
      %v1500 = vmax.f32 %v1258, 0.0
      %v1501 = vmax.f32 %v1261, 0.0
      %v1502 = vmax.f32 %v1266, 0.0
      %v1503 = vmax.f32 %v1269, 0.0
      %v1504 = vmax.f32 %v1274, 0.0
      %v1505 = vmax.f32 %v1277, 0.0
      %v1506 = vmax.f32 %v1282, 0.0
      %v1507 = vmax.f32 %v1285, 0.0
      %v1508 = vmax.f32 %v1290, 0.0
      %v1509 = vmax.f32 %v1293, 0.0
      %v1510 = vmax.f32 %v1298, 0.0
      %v1511 = vmax.f32 %v1301, 0.0
      %v1512 = vmax.f32 %v1306, 0.0
      %v1513 = vmax.f32 %v1309, 0.0
      %v1514 = vmax.f32 %v1314, 0.0
      %v1515 = vmax.f32 %v1317, 0.0
      %v1516 = vmax.f32 %v1322, 0.0
      %v1517 = vmax.f32 %v1325, 0.0
      %v1518 = vmax.f32 %v1330, 0.0
      %v1519 = vmax.f32 %v1333, 0.0
      %v1520 = vmax.f32 %v1338, 0.0
      %v1521 = vmax.f32 %v1341, 0.0
      %v1522 = vmax.f32 %v1346, 0.0
      %v1523 = vmax.f32 %v1349, 0.0
      %v1524 = vmax.f32 %v1354, 0.0
      %v1525 = vmax.f32 %v1357, 0.0
      %v1526 = vmax.f32 %v1362, 0.0
      %v1527 = vmax.f32 %v1365, 0.0
      %v1528 = vmax.f32 %v1370, 0.0
      %v1529 = vmax.f32 %v1373, 0.0
      %v1530 = vmax.f32 %v1378, 0.0
      %v1531 = vmax.f32 %v1381, 0.0
      %v1532 = vmax.f32 %v1386, 0.0
      %v1533 = vmax.f32 %v1389, 0.0
      %v1534 = vmax.f32 %v1394, 0.0
      %v1535 = vmax.f32 %v1397, 0.0
      %v1536 = vmax.f32 %v1402, 0.0
      %v1537 = vmax.f32 %v1405, 0.0
      %v1538 = vmax.f32 %v1410, 0.0
      %v1539 = vmax.f32 %v1413, 0.0
      %v1540 = vmax.f32 %v1418, 0.0
      %v1541 = vmax.f32 %v1421, 0.0
      %v1542 = vmax.f32 %v1426, 0.0
      %v1543 = vmax.f32 %v1429, 0.0
      %v1544 = vmax.f32 %v1434, 0.0
      %v1545 = vmax.f32 %v1437, 0.0
      %v1546 = vmax.f32 %v1442, 0.0
      %v1547 = vmax.f32 %v1445, 0.0
      %v1548 = vmax.f32 %v1450, 0.0
      %v1549 = vmax.f32 %v1453, 0.0
      %v1550 = vmax.f32 %v1458, 0.0
      %v1551 = vmax.f32 %v1461, 0.0
      %v1552 = vmax.f32 %v1466, 0.0
      %v1553 = vmax.f32 %v1469, 0.0
      %v1554 = vmax.f32 %v1474, 0.0
      %v1555 = vmax.f32 %v1477, 0.0
      %v1556 = vmax.f32 %v1482, 0.0
      %v1557 = vmax.f32 %v1485, 0.0
      %v1558 = vmax.f32 %v1490, 0.0
      %v1559 = vmax.f32 %v1493, 0.0
      %1560 = vst.msk [vmem:[%s334] sm:$0xff] %vm471, %v1496
      %1561 = vst.msk [vmem:[%s334 + $0x8] sm:$0xff] %vm471, %v1497
      %1562 = vst.msk [vmem:[%s334 + $0x10] sm:$0xff] %vm471, %v1498
      %1563 = vst.msk [vmem:[%s334 + $0x18] sm:$0xff] %vm471, %v1499
      %1564 = vst.msk [vmem:[%s334 + $0x20] sm:$0xff] %vm471, %v1500
      %1565 = vst.msk [vmem:[%s334 + $0x28] sm:$0xff] %vm471, %v1501
      %1566 = vst.msk [vmem:[%s334 + $0x30] sm:$0xff] %vm471, %v1502
      %1567 = vst.msk [vmem:[%s334 + $0x38] sm:$0xff] %vm471, %v1503
      %1568 = vst.msk [vmem:[%s334 + $0x40] sm:$0xff] %vm471, %v1504
      %1569 = vst.msk [vmem:[%s334 + $0x48] sm:$0xff] %vm471, %v1505
      %1570 = vst.msk [vmem:[%s334 + $0x50] sm:$0xff] %vm471, %v1506
      %1571 = vst.msk [vmem:[%s334 + $0x58] sm:$0xff] %vm471, %v1507
      %1572 = vst.msk [vmem:[%s334 + $0x60] sm:$0xff] %vm471, %v1508
      %1573 = vst.msk [vmem:[%s334 + $0x68] sm:$0xff] %vm471, %v1509
      %1574 = vst.msk [vmem:[%s334 + $0x70] sm:$0xff] %vm471, %v1510
      %1575 = vst.msk [vmem:[%s334 + $0x78] sm:$0xff] %vm471, %v1511
      %1576 = vst.msk [vmem:[%s334 + $0x80] sm:$0xff] %vm471, %v1512
      %1577 = vst.msk [vmem:[%s334 + $0x88] sm:$0xff] %vm471, %v1513
      %1578 = vst.msk [vmem:[%s334 + $0x90] sm:$0xff] %vm471, %v1514
      %1579 = vst.msk [vmem:[%s334 + $0x98] sm:$0xff] %vm471, %v1515
      %1580 = vst.msk [vmem:[%s334 + $0xa0] sm:$0xff] %vm471, %v1516
      %1581 = vst.msk [vmem:[%s334 + $0xa8] sm:$0xff] %vm471, %v1517
      %1582 = vst.msk [vmem:[%s334 + $0xb0] sm:$0xff] %vm471, %v1518
      %1583 = vst.msk [vmem:[%s334 + $0xb8] sm:$0xff] %vm471, %v1519
      %1584 = vst.msk [vmem:[%s334 + $0xc0] sm:$0xff] %vm471, %v1520
      %1585 = vst.msk [vmem:[%s334 + $0xc8] sm:$0xff] %vm471, %v1521
      %1586 = vst.msk [vmem:[%s334 + $0xd0] sm:$0xff] %vm471, %v1522
      %1587 = vst.msk [vmem:[%s334 + $0xd8] sm:$0xff] %vm471, %v1523
      %1588 = vst.msk [vmem:[%s334 + $0xe0] sm:$0xff] %vm471, %v1524
      %1589 = vst.msk [vmem:[%s334 + $0xe8] sm:$0xff] %vm471, %v1525
      %1590 = vst.msk [vmem:[%s334 + $0xf0] sm:$0xff] %vm471, %v1526
      %1591 = vst.msk [vmem:[%s334 + $0xf8] sm:$0xff] %vm471, %v1527
      %1592 = vst.msk [vmem:[%s334 + $0x100] sm:$0xff] %vm471, %v1528
      %1593 = vst.msk [vmem:[%s334 + $0x108] sm:$0xff] %vm471, %v1529
      %1594 = vst.msk [vmem:[%s334 + $0x110] sm:$0xff] %vm471, %v1530
      %1595 = vst.msk [vmem:[%s334 + $0x118] sm:$0xff] %vm471, %v1531
      %1596 = vst.msk [vmem:[%s334 + $0x120] sm:$0xff] %vm471, %v1532
      %1597 = vst.msk [vmem:[%s334 + $0x128] sm:$0xff] %vm471, %v1533
      %1598 = vst.msk [vmem:[%s334 + $0x130] sm:$0xff] %vm471, %v1534
      %1599 = vst.msk [vmem:[%s334 + $0x138] sm:$0xff] %vm471, %v1535
      %1600 = vst.msk [vmem:[%s334 + $0x140] sm:$0xff] %vm471, %v1536
      %1601 = vst.msk [vmem:[%s334 + $0x148] sm:$0xff] %vm471, %v1537
      %1602 = vst.msk [vmem:[%s334 + $0x150] sm:$0xff] %vm471, %v1538
      %1603 = vst.msk [vmem:[%s334 + $0x158] sm:$0xff] %vm471, %v1539
      %1604 = vst.msk [vmem:[%s334 + $0x160] sm:$0xff] %vm471, %v1540
      %1605 = vst.msk [vmem:[%s334 + $0x168] sm:$0xff] %vm471, %v1541
      %1606 = vst.msk [vmem:[%s334 + $0x170] sm:$0xff] %vm471, %v1542
      %1607 = vst.msk [vmem:[%s334 + $0x178] sm:$0xff] %vm471, %v1543
      %1608 = vst.msk [vmem:[%s334 + $0x180] sm:$0xff] %vm471, %v1544
      %1609 = vst.msk [vmem:[%s334 + $0x188] sm:$0xff] %vm471, %v1545
      %1610 = vst.msk [vmem:[%s334 + $0x190] sm:$0xff] %vm471, %v1546
      %1611 = vst.msk [vmem:[%s334 + $0x198] sm:$0xff] %vm471, %v1547
      %1612 = vst.msk [vmem:[%s334 + $0x1a0] sm:$0xff] %vm471, %v1548
      %1613 = vst.msk [vmem:[%s334 + $0x1a8] sm:$0xff] %vm471, %v1549
      %1614 = vst.msk [vmem:[%s334 + $0x1b0] sm:$0xff] %vm471, %v1550
      %1615 = vst.msk [vmem:[%s334 + $0x1b8] sm:$0xff] %vm471, %v1551
      %1616 = vst.msk [vmem:[%s334 + $0x1c0] sm:$0xff] %vm471, %v1552
      %1617 = vst.msk [vmem:[%s334 + $0x1c8] sm:$0xff] %vm471, %v1553
      %1618 = vst.msk [vmem:[%s334 + $0x1d0] sm:$0xff] %vm471, %v1554
      %1619 = vst.msk [vmem:[%s334 + $0x1d8] sm:$0xff] %vm471, %v1555
      %1620 = vst.msk [vmem:[%s334 + $0x1e0] sm:$0xff] %vm471, %v1556
      %1621 = vst.msk [vmem:[%s334 + $0x1e8] sm:$0xff] %vm471, %v1557
      %1622 = vst.msk [vmem:[%s334 + $0x1f0] sm:$0xff] %vm471, %v1558
      %1623 = vst.msk [vmem:[%s334 + $0x1f8] sm:$0xff] %vm471, %v1559
      %s1624 = smul.u32 64, %s20
      %p1625 = scmp.lt.s32.totalorder %s1624, 127
      %s1626 = scalar_select %p1625, %s1624, 127
      %s1627 = smul.addr %s1626, 8
      %s1628 = scalar_lea.vmem %s9, %s1627
      // Predicated region
      $region57: #{tpu_custom_call.1} parent=55 // pred_check
        %p1629 = pneg %p232
      $region58: #{tpu_custom_call.1} parent=55 // pred_check_branch
        %1631 = sbr.rel (%p1629) target = $region60
      $region59: #{tpu_custom_call.1} parent=55 // pred_region
        %s1632 = smul.u32 64, %s20
      $region60: #{tpu_custom_call.1} parent=55 // pred_fallthru
        _
    $region56: #{tpu_custom_call.1} parent=5 // pred_fallthru
      _
    %p1633 = scmp.le.s32.totalorder 2, %s15
    // Predicated region
    $region61: #{tpu_custom_call.1} parent=5 // pred_check
      %p1634 = pneg %p1633
    $region62: #{tpu_custom_call.1} parent=5 // pred_check_branch
      %1636 = sbr.rel (%p1634) target = $region64
    $region63: #{tpu_custom_call.1} parent=5 // pred_region
      %s1637 = ssub.s32 %s15, 2
      // Predicated region
      $region65: #{tpu_custom_call.1} parent=63 // pred_check
        %p1638 = pneg %p238
      $region66: #{tpu_custom_call.1} parent=63 // pred_check_branch
        %1640 = sbr.rel (%p1638) target = $region68
      $region67: #{tpu_custom_call.1} parent=63 // pred_region
        %s1641 = smul.u32 64, %s21
        %p1642 = scmp.lt.s32.totalorder %s1641, 127
        %s1643 = scalar_select %p1642, %s1641, 127
        %s1644 = smul.addr %s1643, 8
        %s1645 = scalar_lea.vmem %s9, %s1644
      $region68: #{tpu_custom_call.1} parent=63 // pred_fallthru
        _
    $region64: #{tpu_custom_call.1} parent=5 // pred_fallthru
      _
  $region6: #{tpu_custom_call.1} parent=0 // loop_footer
    %s19 = sadd.s32 1, %s15
  $region7: #{tpu_custom_call.1} parent=0 // loop_footer_branch
    %14 = sbr.rel target = $region3
  $region8: #{tpu_custom_call.1} parent=0 // loop_exit
    _

</llo_original>
